<compile_context>
chip_gen: v6e
topology: v6e:2x2x1
jax: 0.10.0
libtpu: 0.0.40
codegen_flags: <defaults>
</compile_context>

<pallas_src>
import functools

import jax
import jax.numpy as jnp
from jax.experimental import pallas as pl
from jax.experimental.pallas import tpu as pltpu


def _double_conv_kernel(x_ref, w1_ref, b1_ref, w2_ref, b2_ref, o_ref,
                        xe_ref, he_ref, *, H, W, P, M):
    """Fused conv3x3(pad=1)+ReLU -> conv3x3(pad=1)+ReLU for one batch element (NCHW).

    x_ref : (1, Cin, P)        flattened input block, P = H*W (lane-dense)
    w1_ref: (9, Cout, Cin)     conv1 weights, one (Cout, Cin) matrix per 3x3 tap
    b1_ref: (Cout, 1)          conv1 bias (f32)
    w2_ref: (9, Cout, Cout)    conv2 weights
    b2_ref: (Cout, 1)          conv2 bias (f32)
    o_ref : (1, Cout, P)       flattened output block (lane-dense)
    xe_ref: (Cin,  2*M + P)    VMEM scratch: input staged at lane offset M (128-aligned)
    he_ref: (Cout, 2*M + P)    VMEM scratch: conv1 activation staged at lane offset M

    The M-wide side margins are never written: any tap value that would fall in the
    conv halo is forced to zero by the iota masks below, so no scratch zero-fill is
    needed and no persistence across grid steps is assumed.
    """
    # Halo masks over the flattened spatial axis p = y*W + x (two int vregs of work,
    # computed once per step and shared by both convs).
    p_iota = jax.lax.broadcasted_iota(jnp.int32, (1, P), 1)
    col = p_iota % W
    not_left = col != 0                 # x-1 stays in range
    not_right = col != (W - 1)          # x+1 stays in range
    not_top = p_iota >= W               # y-1 stays in range
    not_bot = p_iota < (P - W)          # y+1 stays in range
    row_mask = {-1: not_top, 0: None, 1: not_bot}
    col_mask = {-1: not_left, 0: None, 1: not_right}

    def conv3x3_relu(src_ref, w_ref, b_ref):
        cout = w_ref.shape[1]
        acc = jnp.zeros((cout, P), jnp.float32)
        for t in range(9):                              # statically unrolled taps
            dy, dx = t // 3 - 1, t % 3 - 1
            s = M + dy * W + dx                         # static lane offset of this tap
            slab = src_ref[:, s:s + P]                  # (C_in_of_stage, P)
            rm, cm = row_mask[dy], col_mask[dx]
            m = rm if cm is None else (cm if rm is None else jnp.logical_and(rm, cm))
            if m is not None:
                slab = jnp.where(m, slab, jnp.zeros((), slab.dtype))
            acc = acc + jnp.dot(w_ref[t], slab, preferred_element_type=jnp.float32)
        acc = acc + b_ref[...].astype(jnp.float32)      # (Cout, 1) broadcast over lanes
        return jnp.maximum(acc, 0.0)                    # (Cout, P) f32

    # Stage the input at a 128-lane-aligned offset (no relayout), then conv1 + ReLU.
    xe_ref[:, M:M + P] = x_ref[0]
    h = conv3x3_relu(xe_ref, w1_ref, b1_ref)

    # Intermediate activation stays in VMEM; conv2 + ReLU; lane-dense output store.
    he_ref[:, M:M + P] = h.astype(he_ref.dtype)
    y = conv3x3_relu(he_ref, w2_ref, b2_ref)
    o_ref[0] = y.astype(o_ref.dtype)


def double_conv(x_nchw, params, *, compute_dtype=None):
    """PyTorch-compatible DoubleConv forward.

    x_nchw: (B, Cin, H, W); params = (w1, b1, w2, b2) with w in PyTorch OIHW layout
    (Cout, Cin, 3, 3) and b of shape (Cout,).  Returns (B, Cout, H, W).

    compute_dtype: optional matmul/activation dtype (e.g. jnp.bfloat16 on v6e/v7x);
    accumulation is always f32 and the output keeps x_nchw.dtype.  bf16 quantizes the
    intermediate activation, so compare against a reference with a looser tolerance.
    """
    w1, b1, w2, b2 = params
    B, Cin, H, W = x_nchw.shape
    Cout = w1.shape[0]
    assert w1.shape == (Cout, Cin, 3, 3) and w2.shape == (Cout, Cout, 3, 3)
    assert H >= 2 and W >= 2
    P = H * W
    M = ((W + 1 + 127) // 128) * 128          # side margin; keeps staging store aligned
    cdt = x_nchw.dtype if compute_dtype is None else jnp.dtype(compute_dtype)

    def prep_w(w):  # OIHW (Cout, Cin, 3, 3) -> (9, Cout, Cin), tap t = ky*3 + kx
        return jnp.transpose(w, (2, 3, 0, 1)).reshape(9, w.shape[0], w.shape[1]).astype(cdt)

    kernel_args = (
        x_nchw.reshape(B, Cin, P).astype(cdt),          # free reshape (contiguous dims)
        prep_w(w1),
        b1.reshape(Cout, 1).astype(jnp.float32),
        prep_w(w2),
        b2.reshape(Cout, 1).astype(jnp.float32),
    )

    # Explicit scoped-VMEM budget derived from the actual block + scratch sizes.
    csz = jnp.dtype(cdt).itemsize
    osz = jnp.dtype(x_nchw.dtype).itemsize
    vmem_need = (2 * (Cin * P * csz + Cout * P * osz)             # double-buffered x / o
                 + 9 * Cout * (Cin + Cout) * csz + 2 * Cout * 4   # resident weights/bias
                 + (Cin + Cout) * (2 * M + P) * csz)              # haloed scratch
    vmem_limit = int(min(max(4 * vmem_need, 16 * 2**20), 64 * 2**20))

    kernel = functools.partial(_double_conv_kernel, H=H, W=W, P=P, M=M)

    out_flat = pl.pallas_call(
        kernel,
        out_shape=jax.ShapeDtypeStruct((B, Cout, P), x_nchw.dtype),
        grid_spec=pltpu.PrefetchScalarGridSpec(
            num_scalar_prefetch=0,
            grid=(B,),
            in_specs=[
                pl.BlockSpec((1, Cin, P), lambda b: (b, 0, 0)),
                pl.BlockSpec((9, Cout, Cin), lambda b: (0, 0, 0)),
                pl.BlockSpec((Cout, 1), lambda b: (0, 0)),
                pl.BlockSpec((9, Cout, Cout), lambda b: (0, 0, 0)),
                pl.BlockSpec((Cout, 1), lambda b: (0, 0)),
            ],
            out_specs=pl.BlockSpec((1, Cout, P), lambda b: (b, 0, 0)),
            scratch_shapes=[
                pltpu.VMEM((Cin, 2 * M + P), cdt),    # haloed input staging
                pltpu.VMEM((Cout, 2 * M + P), cdt),   # haloed intermediate activation
            ],
        ),
        compiler_params=pltpu.CompilerParams(
            dimension_semantics=("parallel",),
            vmem_limit_bytes=vmem_limit),
    )(*kernel_args)

    return out_flat.reshape(B, Cout, H, W)            # free reshape


def init_params(key, in_ch, out_ch, dtype=jnp.float32):
    """Deterministic synthetic params in PyTorch-native OIHW layout."""
    k1, k2, k3, k4 = jax.random.split(key, 4)
    w1 = 0.1 * jax.random.normal(k1, (out_ch, in_ch, 3, 3), dtype)
    b1 = 0.1 * jax.random.normal(k2, (out_ch,), dtype)
    w2 = 0.1 * jax.random.normal(k3, (out_ch, out_ch, 3, 3), dtype)
    b2 = 0.1 * jax.random.normal(k4, (out_ch,), dtype)
    return w1, b1, w2, b2


def _reference(x_nchw, params):
    """Pure-JAX reference using lax.conv (NCHW, OIHW — same as PyTorch)."""
    w1, b1, w2, b2 = params

    def conv(x, w, b):
        y = jax.lax.conv_general_dilated(
            x, w, window_strides=(1, 1), padding=((1, 1), (1, 1)),
            dimension_numbers=("NCHW", "OIHW", "NCHW"))
        return jnp.maximum(y + b[None, :, None, None], 0.0)

    return conv(conv(x_nchw, w1, b1), w2, b2)


if __name__ == "__main__":
    key = jax.random.PRNGKey(0)
    kx, kp = jax.random.split(key)

    B, in_ch, out_ch, H, W = 2, 4, 8, 16, 16
    x = jax.random.normal(kx, (B, in_ch, H, W), jnp.float32)
    params = init_params(kp, in_ch, out_ch)

    out = jax.block_until_ready(double_conv(x, params))

    ref = _reference(x, params)
    assert out.shape == (B, out_ch, H, W)
    assert jnp.allclose(out, ref, atol=1e-4, rtol=1e-4)

    print("KERNEL_OK")
</pallas_src>

<mosaic_0001>
module attributes {stable_mosaic.version = 11 : i64} {
  func.func @_double_conv_kernel(%arg0: i32, %arg1: memref<1x4x256xf32, #tpu.memory_space<vmem>>, %arg2: memref<9x8x4xf32, #tpu.memory_space<vmem>>, %arg3: memref<8x1xf32, #tpu.memory_space<vmem>>, %arg4: memref<9x8x8xf32, #tpu.memory_space<vmem>>, %arg5: memref<8x1xf32, #tpu.memory_space<vmem>>, %arg6: memref<1x8x256xf32, #tpu.memory_space<vmem>>, %arg7: memref<4x512xf32, #tpu.memory_space<vmem>>, %arg8: memref<8x512xf32, #tpu.memory_space<vmem>>) attributes {dimension_semantics = [#tpu.dimension_semantics<parallel>], iteration_bounds = array<i64: 2>, scalar_prefetch = 0 : i64, scratch_operands = 2 : i64, tpu.core_type = #tpu.core_type<tc>, window_params = [{transform_indices = @transform_0, window_bounds = array<i64: 1, 4, 256>}, {pipeline_mode = #tpu.pipeline_mode<synchronous>, transform_indices = @transform_1, window_bounds = array<i64: 9, 8, 4>}, {pipeline_mode = #tpu.pipeline_mode<synchronous>, transform_indices = @transform_2, window_bounds = array<i64: 8, 1>}, {pipeline_mode = #tpu.pipeline_mode<synchronous>, transform_indices = @transform_3, window_bounds = array<i64: 9, 8, 8>}, {pipeline_mode = #tpu.pipeline_mode<synchronous>, transform_indices = @transform_4, window_bounds = array<i64: 8, 1>}, {transform_indices = @transform_5, window_bounds = array<i64: 1, 8, 256>}]} {
    %0 = tpu.iota {dimensions = array<i32: 1>} : vector<1x256xi32>
    %c16_i32 = arith.constant 16 : i32
    %c0_i32 = arith.constant 0 : i32
    %1 = arith.cmpi eq, %c16_i32, %c0_i32 : i32
    %c1_i32 = arith.constant 1 : i32
    %2 = arith.select %1, %c1_i32, %c16_i32 : i32
    %3 = vector.broadcast %2 : i32 to vector<1x256xi32>
    %4 = arith.remsi %0, %3 : vector<1x256xi32>
    %c0_i32_0 = arith.constant 0 : i32
    %5 = vector.broadcast %c0_i32_0 : i32 to vector<1x256xi32>
    %6 = arith.cmpi ne, %4, %5 : vector<1x256xi32>
    %c0_i32_1 = arith.constant 0 : i32
    %7 = vector.broadcast %c0_i32_1 : i32 to vector<1x256xi32>
    %8 = arith.cmpi slt, %4, %7 : vector<1x256xi32>
    %c0_i32_2 = arith.constant 0 : i32
    %9 = arith.cmpi slt, %2, %c0_i32_2 : i32
    %10 = vector.broadcast %9 : i1 to vector<1x256xi1>
    %11 = vector.broadcast %10 : vector<1x256xi1> to vector<1x256xi1>
    %12 = arith.xori %8, %11 : vector<1x256xi1>
    %13 = arith.andi %12, %6 : vector<1x256xi1>
    %14 = vector.broadcast %2 : i32 to vector<1x256xi32>
    %15 = arith.addi %4, %14 : vector<1x256xi32>
    %16 = arith.select %13, %15, %4 : vector<1x256xi1>, vector<1x256xi32>
    %c0_i32_3 = arith.constant 0 : i32
    %17 = vector.broadcast %c0_i32_3 : i32 to vector<1x256xi32>
    %18 = arith.cmpi ne, %16, %17 : vector<1x256xi32>
    %c15_i32 = arith.constant 15 : i32
    %19 = vector.broadcast %c15_i32 : i32 to vector<1x256xi32>
    %20 = arith.cmpi ne, %16, %19 : vector<1x256xi32>
    %c16_i32_4 = arith.constant 16 : i32
    %21 = vector.broadcast %c16_i32_4 : i32 to vector<1x256xi32>
    %22 = arith.cmpi sge, %0, %21 : vector<1x256xi32>
    %c240_i32 = arith.constant 240 : i32
    %23 = vector.broadcast %c240_i32 : i32 to vector<1x256xi32>
    %24 = arith.cmpi slt, %0, %23 : vector<1x256xi32>
    %c0 = arith.constant 0 : index
    %c0_5 = arith.constant 0 : index
    %c0_6 = arith.constant 0 : index
    %25 = vector.load %arg1[%c0, %c0_5, %c0_6] : memref<1x4x256xf32, #tpu.memory_space<vmem>>, vector<1x4x256xf32>
    %26 = vector.shape_cast %25 : vector<1x4x256xf32> to vector<4x256xf32>
    %c0_7 = arith.constant 0 : index
    %c128 = arith.constant 128 : index
    %27 = vector.load %arg7[%c0_7, %c128] : memref<4x512xf32, #tpu.memory_space<vmem>>, vector<4x256xf32>
    tpu.vector_store %arg7[%c0_7, %c128], %26 {strides = array<i32>} : memref<4x512xf32, #tpu.memory_space<vmem>>, vector<4x256xf32>,
    %cst = arith.constant 0.000000e+00 : f32
    %28 = vector.broadcast %cst : f32 to vector<8x256xf32>
    %c0_8 = arith.constant 0 : index
    %c111 = arith.constant 111 : index
    %29 = vector.load %arg7[%c0_8, %c111] : memref<4x512xf32, #tpu.memory_space<vmem>>, vector<4x256xf32>
    %30 = arith.andi %22, %18 : vector<1x256xi1>
    %cst_9 = arith.constant 0.000000e+00 : f32
    %31 = vector.shape_cast %30 : vector<1x256xi1> to vector<1x256xi1>
    %32 = vector.broadcast %31 : vector<1x256xi1> to vector<4x256xi1>
    %33 = vector.broadcast %cst_9 : f32 to vector<4x256xf32>
    %34 = arith.select %32, %29, %33 : vector<4x256xi1>, vector<4x256xf32>
    %c0_10 = arith.constant 0 : index
    %c0_11 = arith.constant 0 : index
    %c0_12 = arith.constant 0 : index
    %35 = vector.load %arg2[%c0_10, %c0_11, %c0_12] : memref<9x8x4xf32, #tpu.memory_space<vmem>>, vector<1x8x4xf32>
    %36 = vector.shape_cast %35 : vector<1x8x4xf32> to vector<8x4xf32>
    %cst_13 = arith.constant dense<0.000000e+00> : vector<8x256xf32>
    %37 = tpu.matmul %36, %34, %cst_13 {dimension_numbers = #tpu.dot_dimension_numbers<[1], [0], [0], [1], [0, 0, 1, 1], [], []>} : vector<8x4xf32>, vector<4x256xf32>, vector<8x256xf32> -> vector<8x256xf32>
    %38 = arith.addf %28, %37 : vector<8x256xf32>
    %c0_14 = arith.constant 0 : index
    %c112 = arith.constant 112 : index
    %39 = vector.load %arg7[%c0_14, %c112] : memref<4x512xf32, #tpu.memory_space<vmem>>, vector<4x256xf32>
    %cst_15 = arith.constant 0.000000e+00 : f32
    %40 = vector.shape_cast %22 : vector<1x256xi1> to vector<1x256xi1>
    %41 = vector.broadcast %40 : vector<1x256xi1> to vector<4x256xi1>
    %42 = vector.broadcast %cst_15 : f32 to vector<4x256xf32>
    %43 = arith.select %41, %39, %42 : vector<4x256xi1>, vector<4x256xf32>
    %c1 = arith.constant 1 : index
    %c0_16 = arith.constant 0 : index
    %c0_17 = arith.constant 0 : index
    %44 = vector.load %arg2[%c1, %c0_16, %c0_17] : memref<9x8x4xf32, #tpu.memory_space<vmem>>, vector<1x8x4xf32>
    %45 = vector.shape_cast %44 : vector<1x8x4xf32> to vector<8x4xf32>
    %cst_18 = arith.constant dense<0.000000e+00> : vector<8x256xf32>
    %46 = tpu.matmul %45, %43, %cst_18 {dimension_numbers = #tpu.dot_dimension_numbers<[1], [0], [0], [1], [0, 0, 1, 1], [], []>} : vector<8x4xf32>, vector<4x256xf32>, vector<8x256xf32> -> vector<8x256xf32>
    %47 = arith.addf %38, %46 : vector<8x256xf32>
    %c0_19 = arith.constant 0 : index
    %c113 = arith.constant 113 : index
    %48 = vector.load %arg7[%c0_19, %c113] : memref<4x512xf32, #tpu.memory_space<vmem>>, vector<4x256xf32>
    %49 = arith.andi %22, %20 : vector<1x256xi1>
    %cst_20 = arith.constant 0.000000e+00 : f32
    %50 = vector.shape_cast %49 : vector<1x256xi1> to vector<1x256xi1>
    %51 = vector.broadcast %50 : vector<1x256xi1> to vector<4x256xi1>
    %52 = vector.broadcast %cst_20 : f32 to vector<4x256xf32>
    %53 = arith.select %51, %48, %52 : vector<4x256xi1>, vector<4x256xf32>
    %c2 = arith.constant 2 : index
    %c0_21 = arith.constant 0 : index
    %c0_22 = arith.constant 0 : index
    %54 = vector.load %arg2[%c2, %c0_21, %c0_22] : memref<9x8x4xf32, #tpu.memory_space<vmem>>, vector<1x8x4xf32>
    %55 = vector.shape_cast %54 : vector<1x8x4xf32> to vector<8x4xf32>
    %cst_23 = arith.constant dense<0.000000e+00> : vector<8x256xf32>
    %56 = tpu.matmul %55, %53, %cst_23 {dimension_numbers = #tpu.dot_dimension_numbers<[1], [0], [0], [1], [0, 0, 1, 1], [], []>} : vector<8x4xf32>, vector<4x256xf32>, vector<8x256xf32> -> vector<8x256xf32>
    %57 = arith.addf %47, %56 : vector<8x256xf32>
    %c0_24 = arith.constant 0 : index
    %c127 = arith.constant 127 : index
    %58 = vector.load %arg7[%c0_24, %c127] : memref<4x512xf32, #tpu.memory_space<vmem>>, vector<4x256xf32>
    %cst_25 = arith.constant 0.000000e+00 : f32
    %59 = vector.shape_cast %18 : vector<1x256xi1> to vector<1x256xi1>
    %60 = vector.broadcast %59 : vector<1x256xi1> to vector<4x256xi1>
    %61 = vector.broadcast %cst_25 : f32 to vector<4x256xf32>
    %62 = arith.select %60, %58, %61 : vector<4x256xi1>, vector<4x256xf32>
    %c3 = arith.constant 3 : index
    %c0_26 = arith.constant 0 : index
    %c0_27 = arith.constant 0 : index
    %63 = vector.load %arg2[%c3, %c0_26, %c0_27] : memref<9x8x4xf32, #tpu.memory_space<vmem>>, vector<1x8x4xf32>
    %64 = vector.shape_cast %63 : vector<1x8x4xf32> to vector<8x4xf32>
    %cst_28 = arith.constant dense<0.000000e+00> : vector<8x256xf32>
    %65 = tpu.matmul %64, %62, %cst_28 {dimension_numbers = #tpu.dot_dimension_numbers<[1], [0], [0], [1], [0, 0, 1, 1], [], []>} : vector<8x4xf32>, vector<4x256xf32>, vector<8x256xf32> -> vector<8x256xf32>
    %66 = arith.addf %57, %65 : vector<8x256xf32>
    %c0_29 = arith.constant 0 : index
    %c128_30 = arith.constant 128 : index
    %67 = vector.load %arg7[%c0_29, %c128_30] : memref<4x512xf32, #tpu.memory_space<vmem>>, vector<4x256xf32>
    %c4 = arith.constant 4 : index
    %c0_31 = arith.constant 0 : index
    %c0_32 = arith.constant 0 : index
    %68 = vector.load %arg2[%c4, %c0_31, %c0_32] : memref<9x8x4xf32, #tpu.memory_space<vmem>>, vector<1x8x4xf32>
    %69 = vector.shape_cast %68 : vector<1x8x4xf32> to vector<8x4xf32>
    %cst_33 = arith.constant dense<0.000000e+00> : vector<8x256xf32>
    %70 = tpu.matmul %69, %67, %cst_33 {dimension_numbers = #tpu.dot_dimension_numbers<[1], [0], [0], [1], [0, 0, 1, 1], [], []>} : vector<8x4xf32>, vector<4x256xf32>, vector<8x256xf32> -> vector<8x256xf32>
    %71 = arith.addf %66, %70 : vector<8x256xf32>
    %c0_34 = arith.constant 0 : index
    %c129 = arith.constant 129 : index
    %72 = vector.load %arg7[%c0_34, %c129] : memref<4x512xf32, #tpu.memory_space<vmem>>, vector<4x256xf32>
    %cst_35 = arith.constant 0.000000e+00 : f32
    %73 = vector.shape_cast %20 : vector<1x256xi1> to vector<1x256xi1>
    %74 = vector.broadcast %73 : vector<1x256xi1> to vector<4x256xi1>
    %75 = vector.broadcast %cst_35 : f32 to vector<4x256xf32>
    %76 = arith.select %74, %72, %75 : vector<4x256xi1>, vector<4x256xf32>
    %c5 = arith.constant 5 : index
    %c0_36 = arith.constant 0 : index
    %c0_37 = arith.constant 0 : index
    %77 = vector.load %arg2[%c5, %c0_36, %c0_37] : memref<9x8x4xf32, #tpu.memory_space<vmem>>, vector<1x8x4xf32>
    %78 = vector.shape_cast %77 : vector<1x8x4xf32> to vector<8x4xf32>
    %cst_38 = arith.constant dense<0.000000e+00> : vector<8x256xf32>
    %79 = tpu.matmul %78, %76, %cst_38 {dimension_numbers = #tpu.dot_dimension_numbers<[1], [0], [0], [1], [0, 0, 1, 1], [], []>} : vector<8x4xf32>, vector<4x256xf32>, vector<8x256xf32> -> vector<8x256xf32>
    %80 = arith.addf %71, %79 : vector<8x256xf32>
    %c0_39 = arith.constant 0 : index
    %c143 = arith.constant 143 : index
    %81 = vector.load %arg7[%c0_39, %c143] : memref<4x512xf32, #tpu.memory_space<vmem>>, vector<4x256xf32>
    %82 = arith.andi %24, %18 : vector<1x256xi1>
    %cst_40 = arith.constant 0.000000e+00 : f32
    %83 = vector.shape_cast %82 : vector<1x256xi1> to vector<1x256xi1>
    %84 = vector.broadcast %83 : vector<1x256xi1> to vector<4x256xi1>
    %85 = vector.broadcast %cst_40 : f32 to vector<4x256xf32>
    %86 = arith.select %84, %81, %85 : vector<4x256xi1>, vector<4x256xf32>
    %c6 = arith.constant 6 : index
    %c0_41 = arith.constant 0 : index
    %c0_42 = arith.constant 0 : index
    %87 = vector.load %arg2[%c6, %c0_41, %c0_42] : memref<9x8x4xf32, #tpu.memory_space<vmem>>, vector<1x8x4xf32>
    %88 = vector.shape_cast %87 : vector<1x8x4xf32> to vector<8x4xf32>
    %cst_43 = arith.constant dense<0.000000e+00> : vector<8x256xf32>
    %89 = tpu.matmul %88, %86, %cst_43 {dimension_numbers = #tpu.dot_dimension_numbers<[1], [0], [0], [1], [0, 0, 1, 1], [], []>} : vector<8x4xf32>, vector<4x256xf32>, vector<8x256xf32> -> vector<8x256xf32>
    %90 = arith.addf %80, %89 : vector<8x256xf32>
    %c0_44 = arith.constant 0 : index
    %c144 = arith.constant 144 : index
    %91 = vector.load %arg7[%c0_44, %c144] : memref<4x512xf32, #tpu.memory_space<vmem>>, vector<4x256xf32>
    %cst_45 = arith.constant 0.000000e+00 : f32
    %92 = vector.shape_cast %24 : vector<1x256xi1> to vector<1x256xi1>
    %93 = vector.broadcast %92 : vector<1x256xi1> to vector<4x256xi1>
    %94 = vector.broadcast %cst_45 : f32 to vector<4x256xf32>
    %95 = arith.select %93, %91, %94 : vector<4x256xi1>, vector<4x256xf32>
    %c7 = arith.constant 7 : index
    %c0_46 = arith.constant 0 : index
    %c0_47 = arith.constant 0 : index
    %96 = vector.load %arg2[%c7, %c0_46, %c0_47] : memref<9x8x4xf32, #tpu.memory_space<vmem>>, vector<1x8x4xf32>
    %97 = vector.shape_cast %96 : vector<1x8x4xf32> to vector<8x4xf32>
    %cst_48 = arith.constant dense<0.000000e+00> : vector<8x256xf32>
    %98 = tpu.matmul %97, %95, %cst_48 {dimension_numbers = #tpu.dot_dimension_numbers<[1], [0], [0], [1], [0, 0, 1, 1], [], []>} : vector<8x4xf32>, vector<4x256xf32>, vector<8x256xf32> -> vector<8x256xf32>
    %99 = arith.addf %90, %98 : vector<8x256xf32>
    %c0_49 = arith.constant 0 : index
    %c145 = arith.constant 145 : index
    %100 = vector.load %arg7[%c0_49, %c145] : memref<4x512xf32, #tpu.memory_space<vmem>>, vector<4x256xf32>
    %101 = arith.andi %24, %20 : vector<1x256xi1>
    %cst_50 = arith.constant 0.000000e+00 : f32
    %102 = vector.shape_cast %101 : vector<1x256xi1> to vector<1x256xi1>
    %103 = vector.broadcast %102 : vector<1x256xi1> to vector<4x256xi1>
    %104 = vector.broadcast %cst_50 : f32 to vector<4x256xf32>
    %105 = arith.select %103, %100, %104 : vector<4x256xi1>, vector<4x256xf32>
    %c8 = arith.constant 8 : index
    %c0_51 = arith.constant 0 : index
    %c0_52 = arith.constant 0 : index
    %106 = vector.load %arg2[%c8, %c0_51, %c0_52] : memref<9x8x4xf32, #tpu.memory_space<vmem>>, vector<1x8x4xf32>
    %107 = vector.shape_cast %106 : vector<1x8x4xf32> to vector<8x4xf32>
    %cst_53 = arith.constant dense<0.000000e+00> : vector<8x256xf32>
    %108 = tpu.matmul %107, %105, %cst_53 {dimension_numbers = #tpu.dot_dimension_numbers<[1], [0], [0], [1], [0, 0, 1, 1], [], []>} : vector<8x4xf32>, vector<4x256xf32>, vector<8x256xf32> -> vector<8x256xf32>
    %109 = arith.addf %99, %108 : vector<8x256xf32>
    %c0_54 = arith.constant 0 : index
    %c0_55 = arith.constant 0 : index
    %110 = vector.load %arg3[%c0_54, %c0_55] : memref<8x1xf32, #tpu.memory_space<vmem>>, vector<8x1xf32>
    %111 = vector.broadcast %110 : vector<8x1xf32> to vector<8x256xf32>
    %112 = arith.addf %109, %111 : vector<8x256xf32>
    %cst_56 = arith.constant 0.000000e+00 : f32
    %113 = vector.broadcast %cst_56 : f32 to vector<8x256xf32>
    %114 = arith.maximumf %112, %113 : vector<8x256xf32>
    %c0_57 = arith.constant 0 : index
    %c128_58 = arith.constant 128 : index
    %115 = vector.load %arg8[%c0_57, %c128_58] : memref<8x512xf32, #tpu.memory_space<vmem>>, vector<8x256xf32>
    tpu.vector_store %arg8[%c0_57, %c128_58], %114 {strides = array<i32>} : memref<8x512xf32, #tpu.memory_space<vmem>>, vector<8x256xf32>,
    %cst_59 = arith.constant 0.000000e+00 : f32
    %116 = vector.broadcast %cst_59 : f32 to vector<8x256xf32>
    %c0_60 = arith.constant 0 : index
    %c111_61 = arith.constant 111 : index
    %117 = vector.load %arg8[%c0_60, %c111_61] : memref<8x512xf32, #tpu.memory_space<vmem>>, vector<8x256xf32>
    %118 = arith.andi %22, %18 : vector<1x256xi1>
    %cst_62 = arith.constant 0.000000e+00 : f32
    %119 = vector.shape_cast %118 : vector<1x256xi1> to vector<1x256xi1>
    %120 = vector.broadcast %119 : vector<1x256xi1> to vector<8x256xi1>
    %121 = vector.broadcast %cst_62 : f32 to vector<8x256xf32>
    %122 = arith.select %120, %117, %121 : vector<8x256xi1>, vector<8x256xf32>
    %c0_63 = arith.constant 0 : index
    %c0_64 = arith.constant 0 : index
    %c0_65 = arith.constant 0 : index
    %123 = vector.load %arg4[%c0_63, %c0_64, %c0_65] : memref<9x8x8xf32, #tpu.memory_space<vmem>>, vector<1x8x8xf32>
    %124 = vector.shape_cast %123 : vector<1x8x8xf32> to vector<8x8xf32>
    %cst_66 = arith.constant dense<0.000000e+00> : vector<8x256xf32>
    %125 = tpu.matmul %124, %122, %cst_66 {dimension_numbers = #tpu.dot_dimension_numbers<[1], [0], [0], [1], [0, 0, 1, 1], [], []>} : vector<8x8xf32>, vector<8x256xf32>, vector<8x256xf32> -> vector<8x256xf32>
    %126 = arith.addf %116, %125 : vector<8x256xf32>
    %c0_67 = arith.constant 0 : index
    %c112_68 = arith.constant 112 : index
    %127 = vector.load %arg8[%c0_67, %c112_68] : memref<8x512xf32, #tpu.memory_space<vmem>>, vector<8x256xf32>
    %cst_69 = arith.constant 0.000000e+00 : f32
    %128 = vector.shape_cast %22 : vector<1x256xi1> to vector<1x256xi1>
    %129 = vector.broadcast %128 : vector<1x256xi1> to vector<8x256xi1>
    %130 = vector.broadcast %cst_69 : f32 to vector<8x256xf32>
    %131 = arith.select %129, %127, %130 : vector<8x256xi1>, vector<8x256xf32>
    %c1_70 = arith.constant 1 : index
    %c0_71 = arith.constant 0 : index
    %c0_72 = arith.constant 0 : index
    %132 = vector.load %arg4[%c1_70, %c0_71, %c0_72] : memref<9x8x8xf32, #tpu.memory_space<vmem>>, vector<1x8x8xf32>
    %133 = vector.shape_cast %132 : vector<1x8x8xf32> to vector<8x8xf32>
    %cst_73 = arith.constant dense<0.000000e+00> : vector<8x256xf32>
    %134 = tpu.matmul %133, %131, %cst_73 {dimension_numbers = #tpu.dot_dimension_numbers<[1], [0], [0], [1], [0, 0, 1, 1], [], []>} : vector<8x8xf32>, vector<8x256xf32>, vector<8x256xf32> -> vector<8x256xf32>
    %135 = arith.addf %126, %134 : vector<8x256xf32>
    %c0_74 = arith.constant 0 : index
    %c113_75 = arith.constant 113 : index
    %136 = vector.load %arg8[%c0_74, %c113_75] : memref<8x512xf32, #tpu.memory_space<vmem>>, vector<8x256xf32>
    %137 = arith.andi %22, %20 : vector<1x256xi1>
    %cst_76 = arith.constant 0.000000e+00 : f32
    %138 = vector.shape_cast %137 : vector<1x256xi1> to vector<1x256xi1>
    %139 = vector.broadcast %138 : vector<1x256xi1> to vector<8x256xi1>
    %140 = vector.broadcast %cst_76 : f32 to vector<8x256xf32>
    %141 = arith.select %139, %136, %140 : vector<8x256xi1>, vector<8x256xf32>
    %c2_77 = arith.constant 2 : index
    %c0_78 = arith.constant 0 : index
    %c0_79 = arith.constant 0 : index
    %142 = vector.load %arg4[%c2_77, %c0_78, %c0_79] : memref<9x8x8xf32, #tpu.memory_space<vmem>>, vector<1x8x8xf32>
    %143 = vector.shape_cast %142 : vector<1x8x8xf32> to vector<8x8xf32>
    %cst_80 = arith.constant dense<0.000000e+00> : vector<8x256xf32>
    %144 = tpu.matmul %143, %141, %cst_80 {dimension_numbers = #tpu.dot_dimension_numbers<[1], [0], [0], [1], [0, 0, 1, 1], [], []>} : vector<8x8xf32>, vector<8x256xf32>, vector<8x256xf32> -> vector<8x256xf32>
    %145 = arith.addf %135, %144 : vector<8x256xf32>
    %c0_81 = arith.constant 0 : index
    %c127_82 = arith.constant 127 : index
    %146 = vector.load %arg8[%c0_81, %c127_82] : memref<8x512xf32, #tpu.memory_space<vmem>>, vector<8x256xf32>
    %cst_83 = arith.constant 0.000000e+00 : f32
    %147 = vector.shape_cast %18 : vector<1x256xi1> to vector<1x256xi1>
    %148 = vector.broadcast %147 : vector<1x256xi1> to vector<8x256xi1>
    %149 = vector.broadcast %cst_83 : f32 to vector<8x256xf32>
    %150 = arith.select %148, %146, %149 : vector<8x256xi1>, vector<8x256xf32>
    %c3_84 = arith.constant 3 : index
    %c0_85 = arith.constant 0 : index
    %c0_86 = arith.constant 0 : index
    %151 = vector.load %arg4[%c3_84, %c0_85, %c0_86] : memref<9x8x8xf32, #tpu.memory_space<vmem>>, vector<1x8x8xf32>
    %152 = vector.shape_cast %151 : vector<1x8x8xf32> to vector<8x8xf32>
    %cst_87 = arith.constant dense<0.000000e+00> : vector<8x256xf32>
    %153 = tpu.matmul %152, %150, %cst_87 {dimension_numbers = #tpu.dot_dimension_numbers<[1], [0], [0], [1], [0, 0, 1, 1], [], []>} : vector<8x8xf32>, vector<8x256xf32>, vector<8x256xf32> -> vector<8x256xf32>
    %154 = arith.addf %145, %153 : vector<8x256xf32>
    %c0_88 = arith.constant 0 : index
    %c128_89 = arith.constant 128 : index
    %155 = vector.load %arg8[%c0_88, %c128_89] : memref<8x512xf32, #tpu.memory_space<vmem>>, vector<8x256xf32>
    %c4_90 = arith.constant 4 : index
    %c0_91 = arith.constant 0 : index
    %c0_92 = arith.constant 0 : index
    %156 = vector.load %arg4[%c4_90, %c0_91, %c0_92] : memref<9x8x8xf32, #tpu.memory_space<vmem>>, vector<1x8x8xf32>
    %157 = vector.shape_cast %156 : vector<1x8x8xf32> to vector<8x8xf32>
    %cst_93 = arith.constant dense<0.000000e+00> : vector<8x256xf32>
    %158 = tpu.matmul %157, %155, %cst_93 {dimension_numbers = #tpu.dot_dimension_numbers<[1], [0], [0], [1], [0, 0, 1, 1], [], []>} : vector<8x8xf32>, vector<8x256xf32>, vector<8x256xf32> -> vector<8x256xf32>
    %159 = arith.addf %154, %158 : vector<8x256xf32>
    %c0_94 = arith.constant 0 : index
    %c129_95 = arith.constant 129 : index
    %160 = vector.load %arg8[%c0_94, %c129_95] : memref<8x512xf32, #tpu.memory_space<vmem>>, vector<8x256xf32>
    %cst_96 = arith.constant 0.000000e+00 : f32
    %161 = vector.shape_cast %20 : vector<1x256xi1> to vector<1x256xi1>
    %162 = vector.broadcast %161 : vector<1x256xi1> to vector<8x256xi1>
    %163 = vector.broadcast %cst_96 : f32 to vector<8x256xf32>
    %164 = arith.select %162, %160, %163 : vector<8x256xi1>, vector<8x256xf32>
    %c5_97 = arith.constant 5 : index
    %c0_98 = arith.constant 0 : index
    %c0_99 = arith.constant 0 : index
    %165 = vector.load %arg4[%c5_97, %c0_98, %c0_99] : memref<9x8x8xf32, #tpu.memory_space<vmem>>, vector<1x8x8xf32>
    %166 = vector.shape_cast %165 : vector<1x8x8xf32> to vector<8x8xf32>
    %cst_100 = arith.constant dense<0.000000e+00> : vector<8x256xf32>
    %167 = tpu.matmul %166, %164, %cst_100 {dimension_numbers = #tpu.dot_dimension_numbers<[1], [0], [0], [1], [0, 0, 1, 1], [], []>} : vector<8x8xf32>, vector<8x256xf32>, vector<8x256xf32> -> vector<8x256xf32>
    %168 = arith.addf %159, %167 : vector<8x256xf32>
    %c0_101 = arith.constant 0 : index
    %c143_102 = arith.constant 143 : index
    %169 = vector.load %arg8[%c0_101, %c143_102] : memref<8x512xf32, #tpu.memory_space<vmem>>, vector<8x256xf32>
    %170 = arith.andi %24, %18 : vector<1x256xi1>
    %cst_103 = arith.constant 0.000000e+00 : f32
    %171 = vector.shape_cast %170 : vector<1x256xi1> to vector<1x256xi1>
    %172 = vector.broadcast %171 : vector<1x256xi1> to vector<8x256xi1>
    %173 = vector.broadcast %cst_103 : f32 to vector<8x256xf32>
    %174 = arith.select %172, %169, %173 : vector<8x256xi1>, vector<8x256xf32>
    %c6_104 = arith.constant 6 : index
    %c0_105 = arith.constant 0 : index
    %c0_106 = arith.constant 0 : index
    %175 = vector.load %arg4[%c6_104, %c0_105, %c0_106] : memref<9x8x8xf32, #tpu.memory_space<vmem>>, vector<1x8x8xf32>
    %176 = vector.shape_cast %175 : vector<1x8x8xf32> to vector<8x8xf32>
    %cst_107 = arith.constant dense<0.000000e+00> : vector<8x256xf32>
    %177 = tpu.matmul %176, %174, %cst_107 {dimension_numbers = #tpu.dot_dimension_numbers<[1], [0], [0], [1], [0, 0, 1, 1], [], []>} : vector<8x8xf32>, vector<8x256xf32>, vector<8x256xf32> -> vector<8x256xf32>
    %178 = arith.addf %168, %177 : vector<8x256xf32>
    %c0_108 = arith.constant 0 : index
    %c144_109 = arith.constant 144 : index
    %179 = vector.load %arg8[%c0_108, %c144_109] : memref<8x512xf32, #tpu.memory_space<vmem>>, vector<8x256xf32>
    %cst_110 = arith.constant 0.000000e+00 : f32
    %180 = vector.shape_cast %24 : vector<1x256xi1> to vector<1x256xi1>
    %181 = vector.broadcast %180 : vector<1x256xi1> to vector<8x256xi1>
    %182 = vector.broadcast %cst_110 : f32 to vector<8x256xf32>
    %183 = arith.select %181, %179, %182 : vector<8x256xi1>, vector<8x256xf32>
    %c7_111 = arith.constant 7 : index
    %c0_112 = arith.constant 0 : index
    %c0_113 = arith.constant 0 : index
    %184 = vector.load %arg4[%c7_111, %c0_112, %c0_113] : memref<9x8x8xf32, #tpu.memory_space<vmem>>, vector<1x8x8xf32>
    %185 = vector.shape_cast %184 : vector<1x8x8xf32> to vector<8x8xf32>
    %cst_114 = arith.constant dense<0.000000e+00> : vector<8x256xf32>
    %186 = tpu.matmul %185, %183, %cst_114 {dimension_numbers = #tpu.dot_dimension_numbers<[1], [0], [0], [1], [0, 0, 1, 1], [], []>} : vector<8x8xf32>, vector<8x256xf32>, vector<8x256xf32> -> vector<8x256xf32>
    %187 = arith.addf %178, %186 : vector<8x256xf32>
    %c0_115 = arith.constant 0 : index
    %c145_116 = arith.constant 145 : index
    %188 = vector.load %arg8[%c0_115, %c145_116] : memref<8x512xf32, #tpu.memory_space<vmem>>, vector<8x256xf32>
    %189 = arith.andi %24, %20 : vector<1x256xi1>
    %cst_117 = arith.constant 0.000000e+00 : f32
    %190 = vector.shape_cast %189 : vector<1x256xi1> to vector<1x256xi1>
    %191 = vector.broadcast %190 : vector<1x256xi1> to vector<8x256xi1>
    %192 = vector.broadcast %cst_117 : f32 to vector<8x256xf32>
    %193 = arith.select %191, %188, %192 : vector<8x256xi1>, vector<8x256xf32>
    %c8_118 = arith.constant 8 : index
    %c0_119 = arith.constant 0 : index
    %c0_120 = arith.constant 0 : index
    %194 = vector.load %arg4[%c8_118, %c0_119, %c0_120] : memref<9x8x8xf32, #tpu.memory_space<vmem>>, vector<1x8x8xf32>
    %195 = vector.shape_cast %194 : vector<1x8x8xf32> to vector<8x8xf32>
    %cst_121 = arith.constant dense<0.000000e+00> : vector<8x256xf32>
    %196 = tpu.matmul %195, %193, %cst_121 {dimension_numbers = #tpu.dot_dimension_numbers<[1], [0], [0], [1], [0, 0, 1, 1], [], []>} : vector<8x8xf32>, vector<8x256xf32>, vector<8x256xf32> -> vector<8x256xf32>
    %197 = arith.addf %187, %196 : vector<8x256xf32>
    %c0_122 = arith.constant 0 : index
    %c0_123 = arith.constant 0 : index
    %198 = vector.load %arg5[%c0_122, %c0_123] : memref<8x1xf32, #tpu.memory_space<vmem>>, vector<8x1xf32>
    %199 = vector.broadcast %198 : vector<8x1xf32> to vector<8x256xf32>
    %200 = arith.addf %197, %199 : vector<8x256xf32>
    %cst_124 = arith.constant 0.000000e+00 : f32
    %201 = vector.broadcast %cst_124 : f32 to vector<8x256xf32>
    %202 = arith.maximumf %200, %201 : vector<8x256xf32>
    %c0_125 = arith.constant 0 : index
    %c0_126 = arith.constant 0 : index
    %c0_127 = arith.constant 0 : index
    %203 = vector.load %arg6[%c0_125, %c0_126, %c0_127] : memref<1x8x256xf32, #tpu.memory_space<vmem>>, vector<1x8x256xf32>
    %204 = vector.shape_cast %203 : vector<1x8x256xf32> to vector<8x256xf32>
    %205 = vector.shape_cast %202 : vector<8x256xf32> to vector<1x8x256xf32>
    tpu.vector_store %arg6[%c0_125, %c0_126, %c0_127], %205 {strides = array<i32>} : memref<1x8x256xf32, #tpu.memory_space<vmem>>, vector<1x8x256xf32>,
    return
  }
  func.func @transform_0(%arg0: i32) -> (i32, i32, i32) {
    %c0_i32 = arith.constant 0 : i32
    %c0_i32_0 = arith.constant 0 : i32
    %c0_i32_1 = arith.constant 0 : i32
    return %arg0, %c0_i32, %c0_i32_0 : i32, i32, i32
  }
  func.func @transform_1(%arg0: i32) -> (i32, i32, i32) {
    %c0_i32 = arith.constant 0 : i32
    %c0_i32_0 = arith.constant 0 : i32
    %c0_i32_1 = arith.constant 0 : i32
    %c0_i32_2 = arith.constant 0 : i32
    return %c0_i32, %c0_i32_0, %c0_i32_1 : i32, i32, i32
  }
  func.func @transform_2(%arg0: i32) -> (i32, i32) {
    %c0_i32 = arith.constant 0 : i32
    %c0_i32_0 = arith.constant 0 : i32
    %c0_i32_1 = arith.constant 0 : i32
    return %c0_i32, %c0_i32_0 : i32, i32
  }
  func.func @transform_3(%arg0: i32) -> (i32, i32, i32) {
    %c0_i32 = arith.constant 0 : i32
    %c0_i32_0 = arith.constant 0 : i32
    %c0_i32_1 = arith.constant 0 : i32
    %c0_i32_2 = arith.constant 0 : i32
    return %c0_i32, %c0_i32_0, %c0_i32_1 : i32, i32, i32
  }
  func.func @transform_4(%arg0: i32) -> (i32, i32) {
    %c0_i32 = arith.constant 0 : i32
    %c0_i32_0 = arith.constant 0 : i32
    %c0_i32_1 = arith.constant 0 : i32
    return %c0_i32, %c0_i32_0 : i32, i32
  }
  func.func @transform_5(%arg0: i32) -> (i32, i32, i32) {
    %c0_i32 = arith.constant 0 : i32
    %c0_i32_0 = arith.constant 0 : i32
    %c0_i32_1 = arith.constant 0 : i32
    return %arg0, %c0_i32, %c0_i32_0 : i32, i32, i32
  }
}

</mosaic_0001>

<llo_original>
// kernel: tpu_custom_call.1
$region0: #{tpu_custom_call.1}
  #allocation0 [shape = 'u32[]', space=smem, size = 0x4, offset = 0x4, fixed_abs, tag = 'smem constant byte address 0x4 - core index']
  #allocation1 [shape = 'u32[144,128]{1,0:T(1,128)}', space=vmem, size = 0x12000, scoped, tag = 'internal scratch']
  #allocation2 [shape = 'f32[4,512]{1,0:T(4,128)}', space=vmem, size = 0x2000, scoped, tag = 'scratch operand']
  #allocation3 [shape = 'f32[8,512]{1,0:T(8,128)}', space=vmem, size = 0x4000, scoped, tag = 'scratch operand']
  %s0 = inlined_call_operand.vmem [shape: f32[2,4,256], index: 0, kind: input, shape index: {}]
  %s1 = inlined_call_operand.vmem [shape: f32[9,8,4], index: 1, kind: input, shape index: {}]
  %s2 = inlined_call_operand.vmem [shape: f32[8,1], index: 2, kind: input, shape index: {}]
  %s3 = inlined_call_operand.vmem [shape: f32[9,8,8], index: 3, kind: input, shape index: {}]
  %s4 = inlined_call_operand.vmem [shape: f32[8,1], index: 4, kind: input, shape index: {}]
  %s5 = inlined_call_operand.hbm [shape: f32[2,8,256], index: 5, kind: output, shape index: {}]
  %s6 = sld [smem:[#allocation0]]
  $region53: #{tpu_custom_call.1} parent=0
    _
  %s8 = ssub.s32 1, %s6
  %s9 = scalar_select 0, %s8, %s6
  $region1: #{tpu_custom_call.1} parent=0
    #allocation4 [shape = 'u8[16384]{0}', space=vmem, size = 0x4000, scoped, tag = 'output window, operand 0']
    #allocation5 [shape = 's32[2]{0}', space=sflag, size = 0x8, scoped, tag = 'scoped memory for tpu_custom_call.1']
    %10 = vsyncpa [#allocation5], 0
    %s11 = scalar_lea.sflag [#allocation5], 1
    %12 = vsyncpa %s11, 0
    loop: start=0, step=1, limit=4
    $region2: #{tpu_custom_call.1} parent=1 // loop_pre_header
      _
    $region3: #{tpu_custom_call.1} parent=1 // loop_header
      %s14 = sphi 0, %s18
      %p15 = scmp.ge.s32.totalorder %s14, 4
      %s24 = sphi 0, %s26
      %s27 = sphi 0, %s24
      %s28 = sphi 0, %s27
      %s44 = sphi 0, %s28
      %s48 = sphi 0, %s48
      %s50 = sphi 0, %s48
      %s51 = sphi 0, %s50
      %s65 = sphi 0, %s51
      %s69 = sphi 0, %s69
      %s71 = sphi 0, %s69
      %s72 = sphi 0, %s71
      %s86 = sphi 0, %s72
      %s90 = sphi 0, %s90
      %s92 = sphi 0, %s90
      %s93 = sphi 0, %s92
      %s107 = sphi 0, %s93
      %s111 = sphi 0, %s111
      %s113 = sphi 0, %s111
      %s114 = sphi 0, %s113
      %s128 = sphi 0, %s114
      %s134 = sphi 0, %s136
      %s137 = sphi 0, %s134
      %s138 = sphi 0, %s137
      %s154 = sphi 0, %s138
    $region4: #{tpu_custom_call.1} parent=1 // loop_header_branch
      %17 = sbr.rel (%p15) target = $region8
    $region5: #{tpu_custom_call.1} parent=1 // loop_body
      %s19 = ssub.s32 %s14, 1
      %s20 = ssub.s32 %s14, 2
      %s21 = sadd.s32 %s14, 1
      %s22 = ssub.s32 %s14, %s21
      %p23 = scmp.eq.s32.totalorder %s22, 0
      %s25 = sadd.s32 %s24, 1
      %s26 = scalar_select %p23, %s24, %s25
      %p29 = pneg %p23
      %p30 = scmp.eq.s32.totalorder %s14, 1
      %p31 = por %p29, %p30
      %p32 = scmp.ne.s32.totalorder %s24, %s27
      %p33 = scmp.eq.s32.totalorder %s14, 0
      %p34 = por %p32, %p33
      %p35 = scmp.ne.s32.totalorder %s24, %s27
      %p36 = scmp.eq.s32.totalorder %s19, 1
      %p37 = por %p35, %p36
      %p38 = scmp.ne.s32.totalorder %s27, %s28
      %p39 = scmp.eq.s32.totalorder %s19, 0
      %p40 = por %p38, %p39
      %p41 = scmp.ne.s32.totalorder %s27, %s28
      %p42 = scmp.eq.s32.totalorder %s20, 1
      %p43 = por %p41, %p42
      %p45 = scmp.ne.s32.totalorder %s28, %s44
      %p46 = scmp.eq.s32.totalorder %s20, 0
      %p47 = por %p45, %p46
      %s49 = sadd.s32 %s48, 1
      %p52 = scmp.eq.s32.totalorder %s14, 1
      %p53 = scmp.ne.s32.totalorder %s48, %s50
      %p54 = scmp.eq.s32.totalorder %s14, 0
      %p55 = por %p53, %p54
      %p56 = scmp.ne.s32.totalorder %s48, %s50
      %p57 = scmp.eq.s32.totalorder %s19, 1
      %p58 = por %p56, %p57
      %p59 = scmp.ne.s32.totalorder %s50, %s51
      %p60 = scmp.eq.s32.totalorder %s19, 0
      %p61 = por %p59, %p60
      %p62 = scmp.ne.s32.totalorder %s50, %s51
      %p63 = scmp.eq.s32.totalorder %s20, 1
      %p64 = por %p62, %p63
      %p66 = scmp.ne.s32.totalorder %s51, %s65
      %p67 = scmp.eq.s32.totalorder %s20, 0
      %p68 = por %p66, %p67
      %s70 = sadd.s32 %s69, 1
      %p73 = scmp.eq.s32.totalorder %s14, 1
      %p74 = scmp.ne.s32.totalorder %s69, %s71
      %p75 = scmp.eq.s32.totalorder %s14, 0
      %p76 = por %p74, %p75
      %p77 = scmp.ne.s32.totalorder %s69, %s71
      %p78 = scmp.eq.s32.totalorder %s19, 1
      %p79 = por %p77, %p78
      %p80 = scmp.ne.s32.totalorder %s71, %s72
      %p81 = scmp.eq.s32.totalorder %s19, 0
      %p82 = por %p80, %p81
      %p83 = scmp.ne.s32.totalorder %s71, %s72
      %p84 = scmp.eq.s32.totalorder %s20, 1
      %p85 = por %p83, %p84
      %p87 = scmp.ne.s32.totalorder %s72, %s86
      %p88 = scmp.eq.s32.totalorder %s20, 0
      %p89 = por %p87, %p88
      %s91 = sadd.s32 %s90, 1
      %p94 = scmp.eq.s32.totalorder %s14, 1
      %p95 = scmp.ne.s32.totalorder %s90, %s92
      %p96 = scmp.eq.s32.totalorder %s14, 0
      %p97 = por %p95, %p96
      %p98 = scmp.ne.s32.totalorder %s90, %s92
      %p99 = scmp.eq.s32.totalorder %s19, 1
      %p100 = por %p98, %p99
      %p101 = scmp.ne.s32.totalorder %s92, %s93
      %p102 = scmp.eq.s32.totalorder %s19, 0
      %p103 = por %p101, %p102
      %p104 = scmp.ne.s32.totalorder %s92, %s93
      %p105 = scmp.eq.s32.totalorder %s20, 1
      %p106 = por %p104, %p105
      %p108 = scmp.ne.s32.totalorder %s93, %s107
      %p109 = scmp.eq.s32.totalorder %s20, 0
      %p110 = por %p108, %p109
      %s112 = sadd.s32 %s111, 1
      %p115 = scmp.eq.s32.totalorder %s14, 1
      %p116 = scmp.ne.s32.totalorder %s111, %s113
      %p117 = scmp.eq.s32.totalorder %s14, 0
      %p118 = por %p116, %p117
      %p119 = scmp.ne.s32.totalorder %s111, %s113
      %p120 = scmp.eq.s32.totalorder %s19, 1
      %p121 = por %p119, %p120
      %p122 = scmp.ne.s32.totalorder %s113, %s114
      %p123 = scmp.eq.s32.totalorder %s19, 0
      %p124 = por %p122, %p123
      %p125 = scmp.ne.s32.totalorder %s113, %s114
      %p126 = scmp.eq.s32.totalorder %s20, 1
      %p127 = por %p125, %p126
      %p129 = scmp.ne.s32.totalorder %s114, %s128
      %p130 = scmp.eq.s32.totalorder %s20, 0
      %p131 = por %p129, %p130
      %s132 = ssub.s32 %s14, %s21
      %p133 = scmp.eq.s32.totalorder %s132, 0
      %s135 = sadd.s32 %s134, 1
      %s136 = scalar_select %p133, %s134, %s135
      %p139 = pneg %p133
      %p140 = scmp.eq.s32.totalorder %s14, 1
      %p141 = por %p139, %p140
      %p142 = scmp.ne.s32.totalorder %s134, %s137
      %p143 = scmp.eq.s32.totalorder %s14, 0
      %p144 = por %p142, %p143
      %p145 = scmp.ne.s32.totalorder %s134, %s137
      %p146 = scmp.eq.s32.totalorder %s19, 1
      %p147 = por %p145, %p146
      %p148 = scmp.ne.s32.totalorder %s137, %s138
      %p149 = scmp.eq.s32.totalorder %s19, 0
      %p150 = por %p148, %p149
      %p151 = scmp.ne.s32.totalorder %s137, %s138
      %p152 = scmp.eq.s32.totalorder %s20, 1
      %p153 = por %p151, %p152
      %p155 = scmp.ne.s32.totalorder %s138, %s154
      %p156 = scmp.eq.s32.totalorder %s20, 0
      %p157 = por %p155, %p156
      %p158 = scmp.le.s32.totalorder 1, %s14
      %p159 = scmp.lt.s32.totalorder %s14, 3
      %p160 = pnand %p158, %p159
      %p161 = pneg %p160
      // Predicated region
      $region9: #{tpu_custom_call.1} parent=5 // pred_check
        _
      $region10: #{tpu_custom_call.1} parent=5 // pred_check_branch
        %163 = sbr.rel (%p160) target = $region12
      $region11: #{tpu_custom_call.1} parent=5 // pred_region
        %s164 = ssub.s32 %s14, 1
        // Predicated region
        $region13: #{tpu_custom_call.1} parent=11 // pred_check
          %p165 = pneg %p61
        $region14: #{tpu_custom_call.1} parent=11 // pred_check_branch
          %167 = sbr.rel (%p165) target = $region16
        $region15: #{tpu_custom_call.1} parent=11 // pred_region
          _
        $region16: #{tpu_custom_call.1} parent=11 // pred_fallthru
          _
        // Predicated region
        $region17: #{tpu_custom_call.1} parent=11 // pred_check
          %p168 = pneg %p82
        $region18: #{tpu_custom_call.1} parent=11 // pred_check_branch
          %170 = sbr.rel (%p168) target = $region20
        $region19: #{tpu_custom_call.1} parent=11 // pred_region
          _
        $region20: #{tpu_custom_call.1} parent=11 // pred_fallthru
          _
        // Predicated region
        $region21: #{tpu_custom_call.1} parent=11 // pred_check
          %p171 = pneg %p103
        $region22: #{tpu_custom_call.1} parent=11 // pred_check_branch
          %173 = sbr.rel (%p171) target = $region24
        $region23: #{tpu_custom_call.1} parent=11 // pred_region
          _
        $region24: #{tpu_custom_call.1} parent=11 // pred_fallthru
          _
        // Predicated region
        $region25: #{tpu_custom_call.1} parent=11 // pred_check
          %p174 = pneg %p124
        $region26: #{tpu_custom_call.1} parent=11 // pred_check_branch
          %176 = sbr.rel (%p174) target = $region28
        $region27: #{tpu_custom_call.1} parent=11 // pred_region
          _
        $region28: #{tpu_custom_call.1} parent=11 // pred_fallthru
          _
      $region12: #{tpu_custom_call.1} parent=5 // pred_fallthru
        _
      %p177 = scmp.lt.s32.totalorder %s14, 2
      // Predicated region
      $region29: #{tpu_custom_call.1} parent=5 // pred_check
        %p178 = pneg %p177
      $region30: #{tpu_custom_call.1} parent=5 // pred_check_branch
        %180 = sbr.rel (%p178) target = $region32
      $region31: #{tpu_custom_call.1} parent=5 // pred_region
        // Predicated region
        $region33: #{tpu_custom_call.1} parent=31 // pred_check
          %p181 = pneg %p34
        $region34: #{tpu_custom_call.1} parent=31 // pred_check_branch
          %183 = sbr.rel (%p181) target = $region36
        $region35: #{tpu_custom_call.1} parent=31 // pred_region
          %p184 = scmp.lt.s32.totalorder %s14, 1
          %s185 = scalar_select %p184, %s14, 1
          %s186 = smul.addr %s185, 2
          %s187 = smul.addr %s186, 4
          %s188 = scalar_lea.vmem %s0, %s187
        $region36: #{tpu_custom_call.1} parent=31 // pred_fallthru
          _
      $region32: #{tpu_custom_call.1} parent=5 // pred_fallthru
        _
      %p189 = scmp.le.s32.totalorder 1, %s14
      %p190 = scmp.lt.s32.totalorder %s14, 3
      %p191 = pnand %p189, %p190
      %p192 = pneg %p191
      // Predicated region
      $region37: #{tpu_custom_call.1} parent=5 // pred_check
        _
      $region38: #{tpu_custom_call.1} parent=5 // pred_check_branch
        %194 = sbr.rel (%p191) target = $region40
      $region39: #{tpu_custom_call.1} parent=5 // pred_region
        %s195 = ssub.s32 %s14, 1
        %p196 = scmp.lt.s32.totalorder %s19, 1
        %s197 = scalar_select %p196, %s19, 1
        %s198 = smul.addr %s197, 2
        %s199 = smul.addr %s198, 4
        %s200 = scalar_lea.vmem %s0, %s199
        %p201 = pneg %p40
        %p202 = pneg %p37
        %p203 = pneg %p61
        %p204 = pneg %p58
        %p205 = pneg %p82
        %p206 = pneg %p79
        %p207 = pneg %p103
        %p208 = pneg %p100
        %p209 = pneg %p124
        %p210 = pneg %p121
        %p211 = pneg %p150
        %p212 = pneg %p147
        %s213 = sand.u32 %s137, 1
        %s214 = scalar_lea.sflag [#allocation5], %s213
        %s215 = sand.u32 %s137, 1
        %s216 = smul.addr %s215, 16
        %s217 = scalar_lea.vmem [#allocation4], %s216
        %p218 = scmp.lt.s32.totalorder %s19, 1
        %s219 = scalar_select %p218, %s19, 1
        %s220 = smul.addr %s219, 2
        %s221 = smul.addr %s220, 4
        %s222 = scalar_lea.vmem %s0, %s221
        %v223 = vlaneseq
        %v224 = vand.u32 %v223, 127
        %v225 = vadd.s32 %v224, 128
        %vm226 = vcmp.lt.s32.totalorder %v224, 0
        %v227 = vsub.s32 0, %v224
        %v228 = vsel %vm226, %v227, %v224
        %v229 = vshrl.u32 %v228, 4
        %v230 = vand.u32 %v228, 15
        %v231 = vsub.s32 0, %v230
        %v232 = vsel %vm226, %v231, %v230
        %vm233 = vcmp.lt.s32.totalorder %v225, 0
        %v234 = vsub.s32 0, %v225
        %v235 = vsel %vm233, %v234, %v225
        %v236 = vshrl.u32 %v235, 4
        %v237 = vand.u32 %v235, 15
        %v238 = vsub.s32 0, %v237
        %v239 = vsel %vm233, %v238, %v237
        %vm240 = vcmp.ne.s32.totalorder %v232, 0
        %vm241 = vcmp.ne.s32.totalorder %v239, 0
        %vm242 = vcmp.lt.s32.totalorder %v232, 0
        %vm243 = vcmp.lt.s32.totalorder %v239, 0
        %vm244 = vmand %vm242, %vm240
        %vm245 = vmand %vm243, %vm241
        %v246 = vadd.s32 %v232, 16
        %v247 = vadd.s32 %v239, 16
        %v248 = vsel %vm244, %v246, %v232
        %v249 = vsel %vm245, %v247, %v239
        %vm250 = vcmp.ne.s32.totalorder %v248, 0
        %vm251 = vcmp.ne.s32.totalorder %v249, 0
        %vm252 = vcmp.ne.s32.totalorder %v248, 15
        %vm253 = vcmp.ne.s32.totalorder %v249, 15
        %vm254 = vcmp.ge.s32.totalorder %v224, 16
        %vm255 = vcmp.ge.s32.totalorder %v225, 16
        %vm256 = vcmp.lt.s32.totalorder %v224, 240
        %vm257 = vcmp.lt.s32.totalorder %v225, 240
        %v258 = vld [vmem:[%s222] sm:$0xff]
        %259 = vst [vmem:[#allocation2 + $0x4] sm:$0xff] %v258
        %v260 = vld [vmem:[#allocation2] sm:$0xff]
        %v261 = vld [vmem:[#allocation2 + $0x8] sm:$0xf]
        %vm262 = vmand %vm254, %vm250
        %vm263 = vmand %vm255, %vm251
        %v264 = vsel %vm262, 1, 0
        %v265 = vsel %vm263, 1, 0
        %vm266 = vcmp.eq.s32.totalorder %v264, 1
        %vm267 = vcmp.eq.s32.totalorder %v265, 1
        %v270 = vcombine.high %v260, %v260
        %271 = vrot.lane.b32.xlu0 %v260, 17
        %v272 = vpop.permute.xlu0 %271
        %273 = vrot.lane.b32.xlu0 %v270, 17
        %v274 = vpop.permute.xlu0 %273
        %275 = vrot.lane.b32.xlu0 %v261, 17
        %v276 = vpop.permute.xlu0 %275
        %vm277 = vcmask 138240
        %v278 = vsel %vm277, %v272, %v274
        %v279 = vsel %vm277, %v274, %v276
        %v282 = vsel %vm266, %v278, 0.0
        %v283 = vsel %vm267, %v279, 0.0
        %v284 = vld [vmem:[%s1] sm:$0xff]
        %v285 = vsel %vm254, 1, 0
        %v286 = vsel %vm255, 1, 0
        %vm287 = vcmp.eq.s32.totalorder %v285, 1
        %vm288 = vcmp.eq.s32.totalorder %v286, 1
        %289 = vrot.lane.b32.xlu0 %v260, 16
        %v290 = vpop.permute.xlu0 %289
        %291 = vrot.lane.b32.xlu0 %v270, 16
        %v292 = vpop.permute.xlu0 %291
        %293 = vrot.lane.b32.xlu0 %v261, 16
        %v294 = vpop.permute.xlu0 %293
        %vm295 = vcmask 130048
        %v296 = vsel %vm295, %v290, %v292
        %v297 = vsel %vm295, %v292, %v294
        %v300 = vsel %vm287, %v296, 0.0
        %v301 = vsel %vm288, %v297, 0.0
        %s302 = scalar_lea.vmem %s1, 8
        %v303 = vld [vmem:[%s302] sm:$0xff]
        %vm304 = vcmask 31744
        %v306 = vsel %vm304, %v303, 0
        %vm308 = vcmask 1043456
        %v310 = vsel %vm308, %v300, 0
        %v313 = vsel %vm308, %v301, 0
        %315 = vmatprep.subr.mxu0 0.0
        %316 = vmatpush1.msra.mxu0 0.0
        %317 = vmatprep.subr.mxu0 0.0
        %318 = vmatpush1.msra.mxu0 0.0
        %319 = vmatprep.subr.mxu0 0.0
        %320 = vmatpush1.msra.mxu0 0.0
        %321 = vmatprep.subr.mxu0 0.0
        %322 = vmatpush1.msra.mxu0 0.0
        %323 = vmatprep.subr.mxu0 0.0
        %324 = vmatpush1.msra.mxu0 0.0
        %325 = vmatprep.subr.mxu0 0.0
        %326 = vmatpush1.msra.mxu0 0.0
        %327 = vmatprep.subr.mxu0 0.0
        %328 = vmatpush1.msra.mxu0 0.0
        %329 = vmatprep.subr.mxu0 0.0
        %330 = vmatpush1.msra.mxu0 0.0
        %331 = vmatprep.subr.mxu0 0.0
        %332 = vmatpush1.msra.mxu0 0.0
        %333 = vmatprep.subr.mxu0 0.0
        %334 = vmatpush1.msra.mxu0 0.0
        %335 = vmatprep.subr.mxu0 0.0
        %336 = vmatpush1.msra.mxu0 0.0
        %337 = vmatprep.subr.mxu0 0.0
        %338 = vmatpush1.msra.mxu0 0.0
        %339 = vmatprep.subr.mxu0 0.0
        %340 = vmatpush1.msra.mxu0 0.0
        %341 = vmatprep.subr.mxu0 0.0
        %342 = vmatpush1.msra.mxu0 0.0
        %343 = vmatprep.subr.mxu0 0.0
        %344 = vmatpush1.msra.mxu0 0.0
        %345 = vmatprep.subr.mxu0 %v313
        %346 = vmatpush1.msra.mxu0 %v310
        %347 = vmatprep.subr.mxu0 0.0
        %348 = vmatpush2.msra.mxu0 0.0
        %349 = vmatprep.subr.mxu0 0.0
        %350 = vmatpush2.msra.mxu0 0.0
        %351 = vmatprep.subr.mxu0 0.0
        %352 = vmatpush2.msra.mxu0 0.0
        %353 = vmatprep.subr.mxu0 0.0
        %354 = vmatpush2.msra.mxu0 0.0
        %355 = vmatprep.subr.mxu0 0.0
        %356 = vmatpush2.msra.mxu0 0.0
        %357 = vmatprep.subr.mxu0 0.0
        %358 = vmatpush2.msra.mxu0 0.0
        %359 = vmatprep.subr.mxu0 0.0
        %360 = vmatpush2.msra.mxu0 0.0
        %361 = vmatprep.subr.mxu0 0.0
        %362 = vmatpush2.msra.mxu0 0.0
        %363 = vmatprep.subr.mxu0 0.0
        %364 = vmatpush2.msra.mxu0 0.0
        %365 = vmatprep.subr.mxu0 0.0
        %366 = vmatpush2.msra.mxu0 0.0
        %367 = vmatprep.subr.mxu0 0.0
        %368 = vmatpush2.msra.mxu0 0.0
        %369 = vmatprep.subr.mxu0 0.0
        %370 = vmatpush2.msra.mxu0 0.0
        %371 = vmatprep.subr.mxu0 0.0
        %372 = vmatpush2.msra.mxu0 0.0
        %373 = vmatprep.subr.mxu0 0.0
        %374 = vmatpush2.msra.mxu0 0.0
        %375 = vmatprep.subr.mxu0 0.0
        %376 = vmatpush2.msra.mxu0 0.0
        %377 = vmatprep.subr.mxu0 0.0
        %378 = vmatpush2.msra.mxu0 0.0
        %379 = vmatprep.mubr.f32.mxu0 0.0
        %380 = vmatmul.mubr.f32.gmra.mxu0 %v306
        %v381 = vpop.f32.mrf.mxu0
        %v382 = vadd.f32 0.0, %v381
        %v383 = vpop.f32.mrf.mxu0
        %v384 = vadd.f32 0.0, %v383
        %385 = vdwg.mxu0
        %v387 = vsel %vm304, %v284, 0
        %v390 = vsel %vm308, %v282, 0
        %v393 = vsel %vm308, %v283, 0
        %395 = vmatprep.subr.mxu0 0.0
        %396 = vmatpush1.msra.mxu0 0.0
        %397 = vmatprep.subr.mxu0 0.0
        %398 = vmatpush1.msra.mxu0 0.0
        %399 = vmatprep.subr.mxu0 0.0
        %400 = vmatpush1.msra.mxu0 0.0
        %401 = vmatprep.subr.mxu0 0.0
        %402 = vmatpush1.msra.mxu0 0.0
        %403 = vmatprep.subr.mxu0 0.0
        %404 = vmatpush1.msra.mxu0 0.0
        %405 = vmatprep.subr.mxu0 0.0
        %406 = vmatpush1.msra.mxu0 0.0
        %407 = vmatprep.subr.mxu0 0.0
        %408 = vmatpush1.msra.mxu0 0.0
        %409 = vmatprep.subr.mxu0 0.0
        %410 = vmatpush1.msra.mxu0 0.0
        %411 = vmatprep.subr.mxu0 0.0
        %412 = vmatpush1.msra.mxu0 0.0
        %413 = vmatprep.subr.mxu0 0.0
        %414 = vmatpush1.msra.mxu0 0.0
        %415 = vmatprep.subr.mxu0 0.0
        %416 = vmatpush1.msra.mxu0 0.0
        %417 = vmatprep.subr.mxu0 0.0
        %418 = vmatpush1.msra.mxu0 0.0
        %419 = vmatprep.subr.mxu0 0.0
        %420 = vmatpush1.msra.mxu0 0.0
        %421 = vmatprep.subr.mxu0 0.0
        %422 = vmatpush1.msra.mxu0 0.0
        %423 = vmatprep.subr.mxu0 0.0
        %424 = vmatpush1.msra.mxu0 0.0
        %425 = vmatprep.subr.mxu0 %v393
        %426 = vmatpush1.msra.mxu0 %v390
        %427 = vmatprep.subr.mxu0 0.0
        %428 = vmatpush2.msra.mxu0 0.0
        %429 = vmatprep.subr.mxu0 0.0
        %430 = vmatpush2.msra.mxu0 0.0
        %431 = vmatprep.subr.mxu0 0.0
        %432 = vmatpush2.msra.mxu0 0.0
        %433 = vmatprep.subr.mxu0 0.0
        %434 = vmatpush2.msra.mxu0 0.0
        %435 = vmatprep.subr.mxu0 0.0
        %436 = vmatpush2.msra.mxu0 0.0
        %437 = vmatprep.subr.mxu0 0.0
        %438 = vmatpush2.msra.mxu0 0.0
        %439 = vmatprep.subr.mxu0 0.0
        %440 = vmatpush2.msra.mxu0 0.0
        %441 = vmatprep.subr.mxu0 0.0
        %442 = vmatpush2.msra.mxu0 0.0
        %443 = vmatprep.subr.mxu0 0.0
        %444 = vmatpush2.msra.mxu0 0.0
        %445 = vmatprep.subr.mxu0 0.0
        %446 = vmatpush2.msra.mxu0 0.0
        %447 = vmatprep.subr.mxu0 0.0
        %448 = vmatpush2.msra.mxu0 0.0
        %449 = vmatprep.subr.mxu0 0.0
        %450 = vmatpush2.msra.mxu0 0.0
        %451 = vmatprep.subr.mxu0 0.0
        %452 = vmatpush2.msra.mxu0 0.0
        %453 = vmatprep.subr.mxu0 0.0
        %454 = vmatpush2.msra.mxu0 0.0
        %455 = vmatprep.subr.mxu0 0.0
        %456 = vmatpush2.msra.mxu0 0.0
        %457 = vmatprep.subr.mxu0 0.0
        %458 = vmatpush2.msra.mxu0 0.0
        %459 = vmatprep.mubr.f32.mxu0 0.0
        %460 = vmatmul.mubr.f32.gmra.mxu0 %v387
        %v461 = vpop.f32.mrf.mxu0
        %v462 = vadd.f32 %v382, %v461
        %v463 = vpop.f32.mrf.mxu0
        %v464 = vadd.f32 %v384, %v463
        %465 = vdwg.mxu0
        %v466 = vld [vmem:[#allocation2] sm:$0xff]
        %v467 = vld [vmem:[#allocation2 + $0x8] sm:$0xf]
        %vm468 = vmand %vm254, %vm252
        %vm469 = vmand %vm255, %vm253
        %v470 = vsel %vm468, 1, 0
        %v471 = vsel %vm469, 1, 0
        %vm472 = vcmp.eq.s32.totalorder %v470, 1
        %vm473 = vcmp.eq.s32.totalorder %v471, 1
        %v476 = vcombine.high %v466, %v466
        %477 = vrot.lane.b32.xlu0 %v466, 15
        %v478 = vpop.permute.xlu0 %477
        %479 = vrot.lane.b32.xlu0 %v476, 15
        %v480 = vpop.permute.xlu0 %479
        %481 = vrot.lane.b32.xlu0 %v467, 15
        %v482 = vpop.permute.xlu0 %481
        %vm483 = vcmask 121856
        %v484 = vsel %vm483, %v478, %v480
        %v485 = vsel %vm483, %v480, %v482
        %v488 = vsel %vm472, %v484, 0.0
        %v489 = vsel %vm473, %v485, 0.0
        %s490 = scalar_lea.vmem %s1, 16
        %v491 = vld [vmem:[%s490] sm:$0xff]
        %v493 = vsel %vm304, %v491, 0
        %v496 = vsel %vm308, %v488, 0
        %v499 = vsel %vm308, %v489, 0
        %501 = vmatprep.subr.mxu0 0.0
        %502 = vmatpush1.msra.mxu0 0.0
        %503 = vmatprep.subr.mxu0 0.0
        %504 = vmatpush1.msra.mxu0 0.0
        %505 = vmatprep.subr.mxu0 0.0
        %506 = vmatpush1.msra.mxu0 0.0
        %507 = vmatprep.subr.mxu0 0.0
        %508 = vmatpush1.msra.mxu0 0.0
        %509 = vmatprep.subr.mxu0 0.0
        %510 = vmatpush1.msra.mxu0 0.0
        %511 = vmatprep.subr.mxu0 0.0
        %512 = vmatpush1.msra.mxu0 0.0
        %513 = vmatprep.subr.mxu0 0.0
        %514 = vmatpush1.msra.mxu0 0.0
        %515 = vmatprep.subr.mxu0 0.0
        %516 = vmatpush1.msra.mxu0 0.0
        %517 = vmatprep.subr.mxu0 0.0
        %518 = vmatpush1.msra.mxu0 0.0
        %519 = vmatprep.subr.mxu0 0.0
        %520 = vmatpush1.msra.mxu0 0.0
        %521 = vmatprep.subr.mxu0 0.0
        %522 = vmatpush1.msra.mxu0 0.0
        %523 = vmatprep.subr.mxu0 0.0
        %524 = vmatpush1.msra.mxu0 0.0
        %525 = vmatprep.subr.mxu0 0.0
        %526 = vmatpush1.msra.mxu0 0.0
        %527 = vmatprep.subr.mxu0 0.0
        %528 = vmatpush1.msra.mxu0 0.0
        %529 = vmatprep.subr.mxu0 0.0
        %530 = vmatpush1.msra.mxu0 0.0
        %531 = vmatprep.subr.mxu0 %v499
        %532 = vmatpush1.msra.mxu0 %v496
        %533 = vmatprep.subr.mxu0 0.0
        %534 = vmatpush2.msra.mxu0 0.0
        %535 = vmatprep.subr.mxu0 0.0
        %536 = vmatpush2.msra.mxu0 0.0
        %537 = vmatprep.subr.mxu0 0.0
        %538 = vmatpush2.msra.mxu0 0.0
        %539 = vmatprep.subr.mxu0 0.0
        %540 = vmatpush2.msra.mxu0 0.0
        %541 = vmatprep.subr.mxu0 0.0
        %542 = vmatpush2.msra.mxu0 0.0
        %543 = vmatprep.subr.mxu0 0.0
        %544 = vmatpush2.msra.mxu0 0.0
        %545 = vmatprep.subr.mxu0 0.0
        %546 = vmatpush2.msra.mxu0 0.0
        %547 = vmatprep.subr.mxu0 0.0
        %548 = vmatpush2.msra.mxu0 0.0
        %549 = vmatprep.subr.mxu0 0.0
        %550 = vmatpush2.msra.mxu0 0.0
        %551 = vmatprep.subr.mxu0 0.0
        %552 = vmatpush2.msra.mxu0 0.0
        %553 = vmatprep.subr.mxu0 0.0
        %554 = vmatpush2.msra.mxu0 0.0
        %555 = vmatprep.subr.mxu0 0.0
        %556 = vmatpush2.msra.mxu0 0.0
        %557 = vmatprep.subr.mxu0 0.0
        %558 = vmatpush2.msra.mxu0 0.0
        %559 = vmatprep.subr.mxu0 0.0
        %560 = vmatpush2.msra.mxu0 0.0
        %561 = vmatprep.subr.mxu0 0.0
        %562 = vmatpush2.msra.mxu0 0.0
        %563 = vmatprep.subr.mxu0 0.0
        %564 = vmatpush2.msra.mxu0 0.0
        %565 = vmatprep.mubr.f32.mxu0 0.0
        %566 = vmatmul.mubr.f32.gmra.mxu0 %v493
        %v567 = vpop.f32.mrf.mxu0
        %v568 = vadd.f32 0.0, %v567
        %v569 = vpop.f32.mrf.mxu0
        %v570 = vadd.f32 0.0, %v569
        %571 = vdwg.mxu0
        %v572 = vadd.f32 %v462, %v568
        %v573 = vadd.f32 %v464, %v570
        %v574 = vld [vmem:[#allocation2] sm:$0xff]
        %v575 = vld [vmem:[#allocation2 + $0x8] sm:$0xf]
        %v576 = vsel %vm250, 1, 0
        %v577 = vsel %vm251, 1, 0
        %vm578 = vcmp.eq.s32.totalorder %v576, 1
        %vm579 = vcmp.eq.s32.totalorder %v577, 1
        %v582 = vcombine.high %v574, %v574
        %583 = vrot.lane.b32.xlu0 %v574, 1
        %v584 = vpop.permute.xlu0 %583
        %585 = vrot.lane.b32.xlu0 %v582, 1
        %v586 = vpop.permute.xlu0 %585
        %587 = vrot.lane.b32.xlu0 %v575, 1
        %v588 = vpop.permute.xlu0 %587
        %vm589 = vcmask 7168
        %v590 = vsel %vm589, %v584, %v586
        %v591 = vsel %vm589, %v586, %v588
        %v594 = vsel %vm578, %v590, 0.0
        %v595 = vsel %vm579, %v591, 0.0
        %s596 = scalar_lea.vmem %s1, 24
        %v597 = vld [vmem:[%s596] sm:$0xff]
        %v599 = vsel %vm304, %v597, 0
        %v602 = vsel %vm308, %v594, 0
        %v605 = vsel %vm308, %v595, 0
        %607 = vmatprep.subr.mxu0 0.0
        %608 = vmatpush1.msra.mxu0 0.0
        %609 = vmatprep.subr.mxu0 0.0
        %610 = vmatpush1.msra.mxu0 0.0
        %611 = vmatprep.subr.mxu0 0.0
        %612 = vmatpush1.msra.mxu0 0.0
        %613 = vmatprep.subr.mxu0 0.0
        %614 = vmatpush1.msra.mxu0 0.0
        %615 = vmatprep.subr.mxu0 0.0
        %616 = vmatpush1.msra.mxu0 0.0
        %617 = vmatprep.subr.mxu0 0.0
        %618 = vmatpush1.msra.mxu0 0.0
        %619 = vmatprep.subr.mxu0 0.0
        %620 = vmatpush1.msra.mxu0 0.0
        %621 = vmatprep.subr.mxu0 0.0
        %622 = vmatpush1.msra.mxu0 0.0
        %623 = vmatprep.subr.mxu0 0.0
        %624 = vmatpush1.msra.mxu0 0.0
        %625 = vmatprep.subr.mxu0 0.0
        %626 = vmatpush1.msra.mxu0 0.0
        %627 = vmatprep.subr.mxu0 0.0
        %628 = vmatpush1.msra.mxu0 0.0
        %629 = vmatprep.subr.mxu0 0.0
        %630 = vmatpush1.msra.mxu0 0.0
        %631 = vmatprep.subr.mxu0 0.0
        %632 = vmatpush1.msra.mxu0 0.0
        %633 = vmatprep.subr.mxu0 0.0
        %634 = vmatpush1.msra.mxu0 0.0
        %635 = vmatprep.subr.mxu0 0.0
        %636 = vmatpush1.msra.mxu0 0.0
        %637 = vmatprep.subr.mxu0 %v605
        %638 = vmatpush1.msra.mxu0 %v602
        %639 = vmatprep.subr.mxu0 0.0
        %640 = vmatpush2.msra.mxu0 0.0
        %641 = vmatprep.subr.mxu0 0.0
        %642 = vmatpush2.msra.mxu0 0.0
        %643 = vmatprep.subr.mxu0 0.0
        %644 = vmatpush2.msra.mxu0 0.0
        %645 = vmatprep.subr.mxu0 0.0
        %646 = vmatpush2.msra.mxu0 0.0
        %647 = vmatprep.subr.mxu0 0.0
        %648 = vmatpush2.msra.mxu0 0.0
        %649 = vmatprep.subr.mxu0 0.0
        %650 = vmatpush2.msra.mxu0 0.0
        %651 = vmatprep.subr.mxu0 0.0
        %652 = vmatpush2.msra.mxu0 0.0
        %653 = vmatprep.subr.mxu0 0.0
        %654 = vmatpush2.msra.mxu0 0.0
        %655 = vmatprep.subr.mxu0 0.0
        %656 = vmatpush2.msra.mxu0 0.0
        %657 = vmatprep.subr.mxu0 0.0
        %658 = vmatpush2.msra.mxu0 0.0
        %659 = vmatprep.subr.mxu0 0.0
        %660 = vmatpush2.msra.mxu0 0.0
        %661 = vmatprep.subr.mxu0 0.0
        %662 = vmatpush2.msra.mxu0 0.0
        %663 = vmatprep.subr.mxu0 0.0
        %664 = vmatpush2.msra.mxu0 0.0
        %665 = vmatprep.subr.mxu0 0.0
        %666 = vmatpush2.msra.mxu0 0.0
        %667 = vmatprep.subr.mxu0 0.0
        %668 = vmatpush2.msra.mxu0 0.0
        %669 = vmatprep.subr.mxu0 0.0
        %670 = vmatpush2.msra.mxu0 0.0
        %671 = vmatprep.mubr.f32.mxu0 0.0
        %672 = vmatmul.mubr.f32.gmra.mxu0 %v599
        %v673 = vpop.f32.mrf.mxu0
        %v674 = vadd.f32 0.0, %v673
        %v675 = vpop.f32.mrf.mxu0
        %v676 = vadd.f32 0.0, %v675
        %677 = vdwg.mxu0
        %v678 = vadd.f32 %v572, %v674
        %v679 = vadd.f32 %v573, %v676
        %v680 = vld [vmem:[#allocation2 + $0x4] sm:$0xff]
        %s681 = scalar_lea.vmem %s1, 32
        %v682 = vld [vmem:[%s681] sm:$0xff]
        %v684 = vcombine.high %v680, %v680
        %v686 = vsel %vm304, %v682, 0
        %v688 = vsel %vm308, %v680, 0
        %v690 = vsel %vm308, %v684, 0
        %692 = vmatprep.subr.mxu0 0.0
        %693 = vmatpush1.msra.mxu0 0.0
        %694 = vmatprep.subr.mxu0 0.0
        %695 = vmatpush1.msra.mxu0 0.0
        %696 = vmatprep.subr.mxu0 0.0
        %697 = vmatpush1.msra.mxu0 0.0
        %698 = vmatprep.subr.mxu0 0.0
        %699 = vmatpush1.msra.mxu0 0.0
        %700 = vmatprep.subr.mxu0 0.0
        %701 = vmatpush1.msra.mxu0 0.0
        %702 = vmatprep.subr.mxu0 0.0
        %703 = vmatpush1.msra.mxu0 0.0
        %704 = vmatprep.subr.mxu0 0.0
        %705 = vmatpush1.msra.mxu0 0.0
        %706 = vmatprep.subr.mxu0 0.0
        %707 = vmatpush1.msra.mxu0 0.0
        %708 = vmatprep.subr.mxu0 0.0
        %709 = vmatpush1.msra.mxu0 0.0
        %710 = vmatprep.subr.mxu0 0.0
        %711 = vmatpush1.msra.mxu0 0.0
        %712 = vmatprep.subr.mxu0 0.0
        %713 = vmatpush1.msra.mxu0 0.0
        %714 = vmatprep.subr.mxu0 0.0
        %715 = vmatpush1.msra.mxu0 0.0
        %716 = vmatprep.subr.mxu0 0.0
        %717 = vmatpush1.msra.mxu0 0.0
        %718 = vmatprep.subr.mxu0 0.0
        %719 = vmatpush1.msra.mxu0 0.0
        %720 = vmatprep.subr.mxu0 0.0
        %721 = vmatpush1.msra.mxu0 0.0
        %722 = vmatprep.subr.mxu0 %v690
        %723 = vmatpush1.msra.mxu0 %v688
        %724 = vmatprep.subr.mxu0 0.0
        %725 = vmatpush2.msra.mxu0 0.0
        %726 = vmatprep.subr.mxu0 0.0
        %727 = vmatpush2.msra.mxu0 0.0
        %728 = vmatprep.subr.mxu0 0.0
        %729 = vmatpush2.msra.mxu0 0.0
        %730 = vmatprep.subr.mxu0 0.0
        %731 = vmatpush2.msra.mxu0 0.0
        %732 = vmatprep.subr.mxu0 0.0
        %733 = vmatpush2.msra.mxu0 0.0
        %734 = vmatprep.subr.mxu0 0.0
        %735 = vmatpush2.msra.mxu0 0.0
        %736 = vmatprep.subr.mxu0 0.0
        %737 = vmatpush2.msra.mxu0 0.0
        %738 = vmatprep.subr.mxu0 0.0
        %739 = vmatpush2.msra.mxu0 0.0
        %740 = vmatprep.subr.mxu0 0.0
        %741 = vmatpush2.msra.mxu0 0.0
        %742 = vmatprep.subr.mxu0 0.0
        %743 = vmatpush2.msra.mxu0 0.0
        %744 = vmatprep.subr.mxu0 0.0
        %745 = vmatpush2.msra.mxu0 0.0
        %746 = vmatprep.subr.mxu0 0.0
        %747 = vmatpush2.msra.mxu0 0.0
        %748 = vmatprep.subr.mxu0 0.0
        %749 = vmatpush2.msra.mxu0 0.0
        %750 = vmatprep.subr.mxu0 0.0
        %751 = vmatpush2.msra.mxu0 0.0
        %752 = vmatprep.subr.mxu0 0.0
        %753 = vmatpush2.msra.mxu0 0.0
        %754 = vmatprep.subr.mxu0 0.0
        %755 = vmatpush2.msra.mxu0 0.0
        %756 = vmatprep.mubr.f32.mxu0 0.0
        %757 = vmatmul.mubr.f32.gmra.mxu0 %v686
        %v758 = vpop.f32.mrf.mxu0
        %v759 = vadd.f32 0.0, %v758
        %v760 = vpop.f32.mrf.mxu0
        %v761 = vadd.f32 0.0, %v760
        %762 = vdwg.mxu0
        %v763 = vadd.f32 %v678, %v759
        %v764 = vadd.f32 %v679, %v761
        %v765 = vld [vmem:[#allocation2 + $0x4] sm:$0xff]
        %v766 = vld [vmem:[#allocation2 + $0xc] sm:$0xf]
        %v767 = vsel %vm252, 1, 0
        %v768 = vsel %vm253, 1, 0
        %vm769 = vcmp.eq.s32.totalorder %v767, 1
        %vm770 = vcmp.eq.s32.totalorder %v768, 1
        %v773 = vcombine.high %v765, %v765
        %774 = vrot.lane.b32.xlu0 %v765, 127
        %v775 = vpop.permute.xlu0 %774
        %776 = vrot.lane.b32.xlu0 %v773, 127
        %v777 = vpop.permute.xlu0 %776
        %778 = vrot.lane.b32.xlu0 %v766, 127
        %v779 = vpop.permute.xlu0 %778
        %vm780 = vcmask 1039360
        %v781 = vsel %vm780, %v775, %v777
        %v782 = vsel %vm780, %v777, %v779
        %v785 = vsel %vm769, %v781, 0.0
        %v786 = vsel %vm770, %v782, 0.0
        %s787 = scalar_lea.vmem %s1, 40
        %v788 = vld [vmem:[%s787] sm:$0xff]
        %v790 = vsel %vm304, %v788, 0
        %v793 = vsel %vm308, %v785, 0
        %v796 = vsel %vm308, %v786, 0
        %798 = vmatprep.subr.mxu0 0.0
        %799 = vmatpush1.msra.mxu0 0.0
        %800 = vmatprep.subr.mxu0 0.0
        %801 = vmatpush1.msra.mxu0 0.0
        %802 = vmatprep.subr.mxu0 0.0
        %803 = vmatpush1.msra.mxu0 0.0
        %804 = vmatprep.subr.mxu0 0.0
        %805 = vmatpush1.msra.mxu0 0.0
        %806 = vmatprep.subr.mxu0 0.0
        %807 = vmatpush1.msra.mxu0 0.0
        %808 = vmatprep.subr.mxu0 0.0
        %809 = vmatpush1.msra.mxu0 0.0
        %810 = vmatprep.subr.mxu0 0.0
        %811 = vmatpush1.msra.mxu0 0.0
        %812 = vmatprep.subr.mxu0 0.0
        %813 = vmatpush1.msra.mxu0 0.0
        %814 = vmatprep.subr.mxu0 0.0
        %815 = vmatpush1.msra.mxu0 0.0
        %816 = vmatprep.subr.mxu0 0.0
        %817 = vmatpush1.msra.mxu0 0.0
        %818 = vmatprep.subr.mxu0 0.0
        %819 = vmatpush1.msra.mxu0 0.0
        %820 = vmatprep.subr.mxu0 0.0
        %821 = vmatpush1.msra.mxu0 0.0
        %822 = vmatprep.subr.mxu0 0.0
        %823 = vmatpush1.msra.mxu0 0.0
        %824 = vmatprep.subr.mxu0 0.0
        %825 = vmatpush1.msra.mxu0 0.0
        %826 = vmatprep.subr.mxu0 0.0
        %827 = vmatpush1.msra.mxu0 0.0
        %828 = vmatprep.subr.mxu0 %v796
        %829 = vmatpush1.msra.mxu0 %v793
        %830 = vmatprep.subr.mxu0 0.0
        %831 = vmatpush2.msra.mxu0 0.0
        %832 = vmatprep.subr.mxu0 0.0
        %833 = vmatpush2.msra.mxu0 0.0
        %834 = vmatprep.subr.mxu0 0.0
        %835 = vmatpush2.msra.mxu0 0.0
        %836 = vmatprep.subr.mxu0 0.0
        %837 = vmatpush2.msra.mxu0 0.0
        %838 = vmatprep.subr.mxu0 0.0
        %839 = vmatpush2.msra.mxu0 0.0
        %840 = vmatprep.subr.mxu0 0.0
        %841 = vmatpush2.msra.mxu0 0.0
        %842 = vmatprep.subr.mxu0 0.0
        %843 = vmatpush2.msra.mxu0 0.0
        %844 = vmatprep.subr.mxu0 0.0
        %845 = vmatpush2.msra.mxu0 0.0
        %846 = vmatprep.subr.mxu0 0.0
        %847 = vmatpush2.msra.mxu0 0.0
        %848 = vmatprep.subr.mxu0 0.0
        %849 = vmatpush2.msra.mxu0 0.0
        %850 = vmatprep.subr.mxu0 0.0
        %851 = vmatpush2.msra.mxu0 0.0
        %852 = vmatprep.subr.mxu0 0.0
        %853 = vmatpush2.msra.mxu0 0.0
        %854 = vmatprep.subr.mxu0 0.0
        %855 = vmatpush2.msra.mxu0 0.0
        %856 = vmatprep.subr.mxu0 0.0
        %857 = vmatpush2.msra.mxu0 0.0
        %858 = vmatprep.subr.mxu0 0.0
        %859 = vmatpush2.msra.mxu0 0.0
        %860 = vmatprep.subr.mxu0 0.0
        %861 = vmatpush2.msra.mxu0 0.0
        %862 = vmatprep.mubr.f32.mxu0 0.0
        %863 = vmatmul.mubr.f32.gmra.mxu0 %v790
        %v864 = vpop.f32.mrf.mxu0
        %v865 = vadd.f32 0.0, %v864
        %v866 = vpop.f32.mrf.mxu0
        %v867 = vadd.f32 0.0, %v866
        %868 = vdwg.mxu0
        %v869 = vadd.f32 %v763, %v865
        %v870 = vadd.f32 %v764, %v867
        %v871 = vld [vmem:[#allocation2 + $0x4] sm:$0xff]
        %v872 = vld [vmem:[#allocation2 + $0xc] sm:$0xf]
        %vm873 = vmand %vm256, %vm250
        %vm874 = vmand %vm257, %vm251
        %v875 = vsel %vm873, 1, 0
        %v876 = vsel %vm874, 1, 0
        %vm877 = vcmp.eq.s32.totalorder %v875, 1
        %vm878 = vcmp.eq.s32.totalorder %v876, 1
        %v881 = vcombine.high %v871, %v871
        %882 = vrot.lane.b32.xlu0 %v871, 113
        %v883 = vpop.permute.xlu0 %882
        %884 = vrot.lane.b32.xlu0 %v881, 113
        %v885 = vpop.permute.xlu0 %884
        %886 = vrot.lane.b32.xlu0 %v872, 113
        %v887 = vpop.permute.xlu0 %886
        %vm888 = vcmask 924672
        %v889 = vsel %vm888, %v883, %v885
        %v890 = vsel %vm888, %v885, %v887
        %v893 = vsel %vm877, %v889, 0.0
        %v894 = vsel %vm878, %v890, 0.0
        %s895 = scalar_lea.vmem %s1, 48
        %v896 = vld [vmem:[%s895] sm:$0xff]
        %v898 = vsel %vm304, %v896, 0
        %v901 = vsel %vm308, %v893, 0
        %v904 = vsel %vm308, %v894, 0
        %906 = vmatprep.subr.mxu0 0.0
        %907 = vmatpush1.msra.mxu0 0.0
        %908 = vmatprep.subr.mxu0 0.0
        %909 = vmatpush1.msra.mxu0 0.0
        %910 = vmatprep.subr.mxu0 0.0
        %911 = vmatpush1.msra.mxu0 0.0
        %912 = vmatprep.subr.mxu0 0.0
        %913 = vmatpush1.msra.mxu0 0.0
        %914 = vmatprep.subr.mxu0 0.0
        %915 = vmatpush1.msra.mxu0 0.0
        %916 = vmatprep.subr.mxu0 0.0
        %917 = vmatpush1.msra.mxu0 0.0
        %918 = vmatprep.subr.mxu0 0.0
        %919 = vmatpush1.msra.mxu0 0.0
        %920 = vmatprep.subr.mxu0 0.0
        %921 = vmatpush1.msra.mxu0 0.0
        %922 = vmatprep.subr.mxu0 0.0
        %923 = vmatpush1.msra.mxu0 0.0
        %924 = vmatprep.subr.mxu0 0.0
        %925 = vmatpush1.msra.mxu0 0.0
        %926 = vmatprep.subr.mxu0 0.0
        %927 = vmatpush1.msra.mxu0 0.0
        %928 = vmatprep.subr.mxu0 0.0
        %929 = vmatpush1.msra.mxu0 0.0
        %930 = vmatprep.subr.mxu0 0.0
        %931 = vmatpush1.msra.mxu0 0.0
        %932 = vmatprep.subr.mxu0 0.0
        %933 = vmatpush1.msra.mxu0 0.0
        %934 = vmatprep.subr.mxu0 0.0
        %935 = vmatpush1.msra.mxu0 0.0
        %936 = vmatprep.subr.mxu0 %v904
        %937 = vmatpush1.msra.mxu0 %v901
        %938 = vmatprep.subr.mxu0 0.0
        %939 = vmatpush2.msra.mxu0 0.0
        %940 = vmatprep.subr.mxu0 0.0
        %941 = vmatpush2.msra.mxu0 0.0
        %942 = vmatprep.subr.mxu0 0.0
        %943 = vmatpush2.msra.mxu0 0.0
        %944 = vmatprep.subr.mxu0 0.0
        %945 = vmatpush2.msra.mxu0 0.0
        %946 = vmatprep.subr.mxu0 0.0
        %947 = vmatpush2.msra.mxu0 0.0
        %948 = vmatprep.subr.mxu0 0.0
        %949 = vmatpush2.msra.mxu0 0.0
        %950 = vmatprep.subr.mxu0 0.0
        %951 = vmatpush2.msra.mxu0 0.0
        %952 = vmatprep.subr.mxu0 0.0
        %953 = vmatpush2.msra.mxu0 0.0
        %954 = vmatprep.subr.mxu0 0.0
        %955 = vmatpush2.msra.mxu0 0.0
        %956 = vmatprep.subr.mxu0 0.0
        %957 = vmatpush2.msra.mxu0 0.0
        %958 = vmatprep.subr.mxu0 0.0
        %959 = vmatpush2.msra.mxu0 0.0
        %960 = vmatprep.subr.mxu0 0.0
        %961 = vmatpush2.msra.mxu0 0.0
        %962 = vmatprep.subr.mxu0 0.0
        %963 = vmatpush2.msra.mxu0 0.0
        %964 = vmatprep.subr.mxu0 0.0
        %965 = vmatpush2.msra.mxu0 0.0
        %966 = vmatprep.subr.mxu0 0.0
        %967 = vmatpush2.msra.mxu0 0.0
        %968 = vmatprep.subr.mxu0 0.0
        %969 = vmatpush2.msra.mxu0 0.0
        %970 = vmatprep.mubr.f32.mxu0 0.0
        %971 = vmatmul.mubr.f32.gmra.mxu0 %v898
        %v972 = vpop.f32.mrf.mxu0
        %v973 = vadd.f32 0.0, %v972
        %v974 = vpop.f32.mrf.mxu0
        %v975 = vadd.f32 0.0, %v974
        %976 = vdwg.mxu0
        %v977 = vadd.f32 %v869, %v973
        %v978 = vadd.f32 %v870, %v975
        %v979 = vld [vmem:[#allocation2 + $0x4] sm:$0xff]
        %v980 = vld [vmem:[#allocation2 + $0xc] sm:$0xf]
        %v981 = vsel %vm256, 1, 0
        %v982 = vsel %vm257, 1, 0
        %vm983 = vcmp.eq.s32.totalorder %v981, 1
        %vm984 = vcmp.eq.s32.totalorder %v982, 1
        %v987 = vcombine.high %v979, %v979
        %988 = vrot.lane.b32.xlu0 %v979, 112
        %v989 = vpop.permute.xlu0 %988
        %990 = vrot.lane.b32.xlu0 %v987, 112
        %v991 = vpop.permute.xlu0 %990
        %992 = vrot.lane.b32.xlu0 %v980, 112
        %v993 = vpop.permute.xlu0 %992
        %vm994 = vcmask 916480
        %v995 = vsel %vm994, %v989, %v991
        %v996 = vsel %vm994, %v991, %v993
        %v999 = vsel %vm983, %v995, 0.0
        %v1000 = vsel %vm984, %v996, 0.0
        %s1001 = scalar_lea.vmem %s1, 56
        %v1002 = vld [vmem:[%s1001] sm:$0xff]
        %v1004 = vsel %vm304, %v1002, 0
        %v1007 = vsel %vm308, %v999, 0
        %v1010 = vsel %vm308, %v1000, 0
        %1012 = vmatprep.subr.mxu0 0.0
        %1013 = vmatpush1.msra.mxu0 0.0
        %1014 = vmatprep.subr.mxu0 0.0
        %1015 = vmatpush1.msra.mxu0 0.0
        %1016 = vmatprep.subr.mxu0 0.0
        %1017 = vmatpush1.msra.mxu0 0.0
        %1018 = vmatprep.subr.mxu0 0.0
        %1019 = vmatpush1.msra.mxu0 0.0
        %1020 = vmatprep.subr.mxu0 0.0
        %1021 = vmatpush1.msra.mxu0 0.0
        %1022 = vmatprep.subr.mxu0 0.0
        %1023 = vmatpush1.msra.mxu0 0.0
        %1024 = vmatprep.subr.mxu0 0.0
        %1025 = vmatpush1.msra.mxu0 0.0
        %1026 = vmatprep.subr.mxu0 0.0
        %1027 = vmatpush1.msra.mxu0 0.0
        %1028 = vmatprep.subr.mxu0 0.0
        %1029 = vmatpush1.msra.mxu0 0.0
        %1030 = vmatprep.subr.mxu0 0.0
        %1031 = vmatpush1.msra.mxu0 0.0
        %1032 = vmatprep.subr.mxu0 0.0
        %1033 = vmatpush1.msra.mxu0 0.0
        %1034 = vmatprep.subr.mxu0 0.0
        %1035 = vmatpush1.msra.mxu0 0.0
        %1036 = vmatprep.subr.mxu0 0.0
        %1037 = vmatpush1.msra.mxu0 0.0
        %1038 = vmatprep.subr.mxu0 0.0
        %1039 = vmatpush1.msra.mxu0 0.0
        %1040 = vmatprep.subr.mxu0 0.0
        %1041 = vmatpush1.msra.mxu0 0.0
        %1042 = vmatprep.subr.mxu0 %v1010
        %1043 = vmatpush1.msra.mxu0 %v1007
        %1044 = vmatprep.subr.mxu0 0.0
        %1045 = vmatpush2.msra.mxu0 0.0
        %1046 = vmatprep.subr.mxu0 0.0
        %1047 = vmatpush2.msra.mxu0 0.0
        %1048 = vmatprep.subr.mxu0 0.0
        %1049 = vmatpush2.msra.mxu0 0.0
        %1050 = vmatprep.subr.mxu0 0.0
        %1051 = vmatpush2.msra.mxu0 0.0
        %1052 = vmatprep.subr.mxu0 0.0
        %1053 = vmatpush2.msra.mxu0 0.0
        %1054 = vmatprep.subr.mxu0 0.0
        %1055 = vmatpush2.msra.mxu0 0.0
        %1056 = vmatprep.subr.mxu0 0.0
        %1057 = vmatpush2.msra.mxu0 0.0
        %1058 = vmatprep.subr.mxu0 0.0
        %1059 = vmatpush2.msra.mxu0 0.0
        %1060 = vmatprep.subr.mxu0 0.0
        %1061 = vmatpush2.msra.mxu0 0.0
        %1062 = vmatprep.subr.mxu0 0.0
        %1063 = vmatpush2.msra.mxu0 0.0
        %1064 = vmatprep.subr.mxu0 0.0
        %1065 = vmatpush2.msra.mxu0 0.0
        %1066 = vmatprep.subr.mxu0 0.0
        %1067 = vmatpush2.msra.mxu0 0.0
        %1068 = vmatprep.subr.mxu0 0.0
        %1069 = vmatpush2.msra.mxu0 0.0
        %1070 = vmatprep.subr.mxu0 0.0
        %1071 = vmatpush2.msra.mxu0 0.0
        %1072 = vmatprep.subr.mxu0 0.0
        %1073 = vmatpush2.msra.mxu0 0.0
        %1074 = vmatprep.subr.mxu0 0.0
        %1075 = vmatpush2.msra.mxu0 0.0
        %1076 = vmatprep.mubr.f32.mxu0 0.0
        %1077 = vmatmul.mubr.f32.gmra.mxu0 %v1004
        %v1078 = vpop.f32.mrf.mxu0
        %v1079 = vadd.f32 0.0, %v1078
        %v1080 = vpop.f32.mrf.mxu0
        %v1081 = vadd.f32 0.0, %v1080
        %1082 = vdwg.mxu0
        %v1083 = vadd.f32 %v977, %v1079
        %v1084 = vadd.f32 %v978, %v1081
        %v1085 = vld [vmem:[#allocation2 + $0x4] sm:$0xff]
        %v1086 = vld [vmem:[#allocation2 + $0xc] sm:$0xf]
        %vm1087 = vmand %vm256, %vm252
        %vm1088 = vmand %vm257, %vm253
        %v1089 = vsel %vm1087, 1, 0
        %v1090 = vsel %vm1088, 1, 0
        %vm1091 = vcmp.eq.s32.totalorder %v1089, 1
        %vm1092 = vcmp.eq.s32.totalorder %v1090, 1
        %v1095 = vcombine.high %v1085, %v1085
        %1096 = vrot.lane.b32.xlu0 %v1085, 111
        %v1097 = vpop.permute.xlu0 %1096
        %1098 = vrot.lane.b32.xlu0 %v1095, 111
        %v1099 = vpop.permute.xlu0 %1098
        %1100 = vrot.lane.b32.xlu0 %v1086, 111
        %v1101 = vpop.permute.xlu0 %1100
        %vm1102 = vcmask 908288
        %v1103 = vsel %vm1102, %v1097, %v1099
        %v1104 = vsel %vm1102, %v1099, %v1101
        %v1107 = vsel %vm1091, %v1103, 0.0
        %v1108 = vsel %vm1092, %v1104, 0.0
        %s1109 = scalar_lea.vmem %s1, 64
        %v1110 = vld [vmem:[%s1109] sm:$0xff]
        %v1112 = vsel %vm304, %v1110, 0
        %v1115 = vsel %vm308, %v1107, 0
        %v1118 = vsel %vm308, %v1108, 0
        %1120 = vmatprep.subr.mxu0 0.0
        %1121 = vmatpush1.msra.mxu0 0.0
        %1122 = vmatprep.subr.mxu0 0.0
        %1123 = vmatpush1.msra.mxu0 0.0
        %1124 = vmatprep.subr.mxu0 0.0
        %1125 = vmatpush1.msra.mxu0 0.0
        %1126 = vmatprep.subr.mxu0 0.0
        %1127 = vmatpush1.msra.mxu0 0.0
        %1128 = vmatprep.subr.mxu0 0.0
        %1129 = vmatpush1.msra.mxu0 0.0
        %1130 = vmatprep.subr.mxu0 0.0
        %1131 = vmatpush1.msra.mxu0 0.0
        %1132 = vmatprep.subr.mxu0 0.0
        %1133 = vmatpush1.msra.mxu0 0.0
        %1134 = vmatprep.subr.mxu0 0.0
        %1135 = vmatpush1.msra.mxu0 0.0
        %1136 = vmatprep.subr.mxu0 0.0
        %1137 = vmatpush1.msra.mxu0 0.0
        %1138 = vmatprep.subr.mxu0 0.0
        %1139 = vmatpush1.msra.mxu0 0.0
        %1140 = vmatprep.subr.mxu0 0.0
        %1141 = vmatpush1.msra.mxu0 0.0
        %1142 = vmatprep.subr.mxu0 0.0
        %1143 = vmatpush1.msra.mxu0 0.0
        %1144 = vmatprep.subr.mxu0 0.0
        %1145 = vmatpush1.msra.mxu0 0.0
        %1146 = vmatprep.subr.mxu0 0.0
        %1147 = vmatpush1.msra.mxu0 0.0
        %1148 = vmatprep.subr.mxu0 0.0
        %1149 = vmatpush1.msra.mxu0 0.0
        %1150 = vmatprep.subr.mxu0 %v1118
        %1151 = vmatpush1.msra.mxu0 %v1115
        %1152 = vmatprep.subr.mxu0 0.0
        %1153 = vmatpush2.msra.mxu0 0.0
        %1154 = vmatprep.subr.mxu0 0.0
        %1155 = vmatpush2.msra.mxu0 0.0
        %1156 = vmatprep.subr.mxu0 0.0
        %1157 = vmatpush2.msra.mxu0 0.0
        %1158 = vmatprep.subr.mxu0 0.0
        %1159 = vmatpush2.msra.mxu0 0.0
        %1160 = vmatprep.subr.mxu0 0.0
        %1161 = vmatpush2.msra.mxu0 0.0
        %1162 = vmatprep.subr.mxu0 0.0
        %1163 = vmatpush2.msra.mxu0 0.0
        %1164 = vmatprep.subr.mxu0 0.0
        %1165 = vmatpush2.msra.mxu0 0.0
        %1166 = vmatprep.subr.mxu0 0.0
        %1167 = vmatpush2.msra.mxu0 0.0
        %1168 = vmatprep.subr.mxu0 0.0
        %1169 = vmatpush2.msra.mxu0 0.0
        %1170 = vmatprep.subr.mxu0 0.0
        %1171 = vmatpush2.msra.mxu0 0.0
        %1172 = vmatprep.subr.mxu0 0.0
        %1173 = vmatpush2.msra.mxu0 0.0
        %1174 = vmatprep.subr.mxu0 0.0
        %1175 = vmatpush2.msra.mxu0 0.0
        %1176 = vmatprep.subr.mxu0 0.0
        %1177 = vmatpush2.msra.mxu0 0.0
        %1178 = vmatprep.subr.mxu0 0.0
        %1179 = vmatpush2.msra.mxu0 0.0
        %1180 = vmatprep.subr.mxu0 0.0
        %1181 = vmatpush2.msra.mxu0 0.0
        %1182 = vmatprep.subr.mxu0 0.0
        %1183 = vmatpush2.msra.mxu0 0.0
        %1184 = vmatprep.mubr.f32.mxu0 0.0
        %1185 = vmatmul.mubr.f32.gmra.mxu0 %v1112
        %v1186 = vpop.f32.mrf.mxu0
        %v1187 = vadd.f32 0.0, %v1186
        %v1188 = vpop.f32.mrf.mxu0
        %v1189 = vadd.f32 0.0, %v1188
        %1190 = vdwg.mxu0
        %v1191 = vadd.f32 %v1083, %v1187
        %v1192 = vadd.f32 %v1084, %v1189
        %v1193 = vld [vmem:[%s2] sm:$0xff]
        %1195 = vset.pattern.permute.xlu0 0
        %1196 = vperm.xlu0 %1195, %v1193
        %v1197 = vpop.permute.xlu0 %1196
        %v1199 = vadd.f32 %v1191, %v1197
        %v1200 = vadd.f32 %v1192, %v1197
        %v1201 = vmax.f32 %v1199, 0.0
        %v1202 = vmax.f32 %v1200, 0.0
        %1203 = vst [vmem:[#allocation3 + $0x8] sm:$0xff] %v1201
        %1204 = vst [vmem:[#allocation3 + $0x10] sm:$0xff] %v1202
        %v1205 = vld [vmem:[#allocation3] sm:$0xff]
        %v1206 = vld [vmem:[#allocation3 + $0x8] sm:$0xff]
        %v1207 = vld [vmem:[#allocation3 + $0x10] sm:$0xff]
        %1211 = vrot.lane.b32.xlu0 %v1205, 17
        %v1212 = vpop.permute.xlu0 %1211
        %1213 = vrot.lane.b32.xlu0 %v1206, 17
        %v1214 = vpop.permute.xlu0 %1213
        %1215 = vrot.lane.b32.xlu0 %v1207, 17
        %v1216 = vpop.permute.xlu0 %1215
        %v1217 = vsel %vm277, %v1212, %v1214
        %v1218 = vsel %vm277, %v1214, %v1216
        %v1221 = vsel %vm266, %v1217, 0.0
        %v1222 = vsel %vm267, %v1218, 0.0
        %v1223 = vld [vmem:[%s3] sm:$0xff]
        %1224 = vrot.lane.b32.xlu0 %v1205, 16
        %v1225 = vpop.permute.xlu0 %1224
        %1226 = vrot.lane.b32.xlu0 %v1206, 16
        %v1227 = vpop.permute.xlu0 %1226
        %1228 = vrot.lane.b32.xlu0 %v1207, 16
        %v1229 = vpop.permute.xlu0 %1228
        %v1230 = vsel %vm295, %v1225, %v1227
        %v1231 = vsel %vm295, %v1227, %v1229
        %v1234 = vsel %vm287, %v1230, 0.0
        %v1235 = vsel %vm288, %v1231, 0.0
        %s1236 = scalar_lea.vmem %s3, 8
        %v1237 = vld [vmem:[%s1236] sm:$0xff]
        %vm1238 = vcmask 64512
        %v1240 = vsel %vm1238, %v1237, 0
        %1242 = vmatprep.subr.mxu0 0.0
        %1243 = vmatpush1.msra.mxu0 0.0
        %1244 = vmatprep.subr.mxu0 0.0
        %1245 = vmatpush1.msra.mxu0 0.0
        %1246 = vmatprep.subr.mxu0 0.0
        %1247 = vmatpush1.msra.mxu0 0.0
        %1248 = vmatprep.subr.mxu0 0.0
        %1249 = vmatpush1.msra.mxu0 0.0
        %1250 = vmatprep.subr.mxu0 0.0
        %1251 = vmatpush1.msra.mxu0 0.0
        %1252 = vmatprep.subr.mxu0 0.0
        %1253 = vmatpush1.msra.mxu0 0.0
        %1254 = vmatprep.subr.mxu0 0.0
        %1255 = vmatpush1.msra.mxu0 0.0
        %1256 = vmatprep.subr.mxu0 0.0
        %1257 = vmatpush1.msra.mxu0 0.0
        %1258 = vmatprep.subr.mxu0 0.0
        %1259 = vmatpush1.msra.mxu0 0.0
        %1260 = vmatprep.subr.mxu0 0.0
        %1261 = vmatpush1.msra.mxu0 0.0
        %1262 = vmatprep.subr.mxu0 0.0
        %1263 = vmatpush1.msra.mxu0 0.0
        %1264 = vmatprep.subr.mxu0 0.0
        %1265 = vmatpush1.msra.mxu0 0.0
        %1266 = vmatprep.subr.mxu0 0.0
        %1267 = vmatpush1.msra.mxu0 0.0
        %1268 = vmatprep.subr.mxu0 0.0
        %1269 = vmatpush1.msra.mxu0 0.0
        %1270 = vmatprep.subr.mxu0 0.0
        %1271 = vmatpush1.msra.mxu0 0.0
        %1272 = vmatprep.subr.mxu0 %v1235
        %1273 = vmatpush1.msra.mxu0 %v1234
        %1274 = vmatprep.subr.mxu0 0.0
        %1275 = vmatpush2.msra.mxu0 0.0
        %1276 = vmatprep.subr.mxu0 0.0
        %1277 = vmatpush2.msra.mxu0 0.0
        %1278 = vmatprep.subr.mxu0 0.0
        %1279 = vmatpush2.msra.mxu0 0.0
        %1280 = vmatprep.subr.mxu0 0.0
        %1281 = vmatpush2.msra.mxu0 0.0
        %1282 = vmatprep.subr.mxu0 0.0
        %1283 = vmatpush2.msra.mxu0 0.0
        %1284 = vmatprep.subr.mxu0 0.0
        %1285 = vmatpush2.msra.mxu0 0.0
        %1286 = vmatprep.subr.mxu0 0.0
        %1287 = vmatpush2.msra.mxu0 0.0
        %1288 = vmatprep.subr.mxu0 0.0
        %1289 = vmatpush2.msra.mxu0 0.0
        %1290 = vmatprep.subr.mxu0 0.0
        %1291 = vmatpush2.msra.mxu0 0.0
        %1292 = vmatprep.subr.mxu0 0.0
        %1293 = vmatpush2.msra.mxu0 0.0
        %1294 = vmatprep.subr.mxu0 0.0
        %1295 = vmatpush2.msra.mxu0 0.0
        %1296 = vmatprep.subr.mxu0 0.0
        %1297 = vmatpush2.msra.mxu0 0.0
        %1298 = vmatprep.subr.mxu0 0.0
        %1299 = vmatpush2.msra.mxu0 0.0
        %1300 = vmatprep.subr.mxu0 0.0
        %1301 = vmatpush2.msra.mxu0 0.0
        %1302 = vmatprep.subr.mxu0 0.0
        %1303 = vmatpush2.msra.mxu0 0.0
        %1304 = vmatprep.subr.mxu0 0.0
        %1305 = vmatpush2.msra.mxu0 0.0
        %1306 = vmatprep.mubr.f32.mxu0 0.0
        %1307 = vmatmul.mubr.f32.gmra.mxu0 %v1240
        %v1308 = vpop.f32.mrf.mxu0
        %v1309 = vadd.f32 0.0, %v1308
        %v1310 = vpop.f32.mrf.mxu0
        %v1311 = vadd.f32 0.0, %v1310
        %1312 = vdwg.mxu0
        %v1314 = vsel %vm1238, %v1223, 0
        %1316 = vmatprep.subr.mxu0 0.0
        %1317 = vmatpush1.msra.mxu0 0.0
        %1318 = vmatprep.subr.mxu0 0.0
        %1319 = vmatpush1.msra.mxu0 0.0
        %1320 = vmatprep.subr.mxu0 0.0
        %1321 = vmatpush1.msra.mxu0 0.0
        %1322 = vmatprep.subr.mxu0 0.0
        %1323 = vmatpush1.msra.mxu0 0.0
        %1324 = vmatprep.subr.mxu0 0.0
        %1325 = vmatpush1.msra.mxu0 0.0
        %1326 = vmatprep.subr.mxu0 0.0
        %1327 = vmatpush1.msra.mxu0 0.0
        %1328 = vmatprep.subr.mxu0 0.0
        %1329 = vmatpush1.msra.mxu0 0.0
        %1330 = vmatprep.subr.mxu0 0.0
        %1331 = vmatpush1.msra.mxu0 0.0
        %1332 = vmatprep.subr.mxu0 0.0
        %1333 = vmatpush1.msra.mxu0 0.0
        %1334 = vmatprep.subr.mxu0 0.0
        %1335 = vmatpush1.msra.mxu0 0.0
        %1336 = vmatprep.subr.mxu0 0.0
        %1337 = vmatpush1.msra.mxu0 0.0
        %1338 = vmatprep.subr.mxu0 0.0
        %1339 = vmatpush1.msra.mxu0 0.0
        %1340 = vmatprep.subr.mxu0 0.0
        %1341 = vmatpush1.msra.mxu0 0.0
        %1342 = vmatprep.subr.mxu0 0.0
        %1343 = vmatpush1.msra.mxu0 0.0
        %1344 = vmatprep.subr.mxu0 0.0
        %1345 = vmatpush1.msra.mxu0 0.0
        %1346 = vmatprep.subr.mxu0 %v1222
        %1347 = vmatpush1.msra.mxu0 %v1221
        %1348 = vmatprep.subr.mxu0 0.0
        %1349 = vmatpush2.msra.mxu0 0.0
        %1350 = vmatprep.subr.mxu0 0.0
        %1351 = vmatpush2.msra.mxu0 0.0
        %1352 = vmatprep.subr.mxu0 0.0
        %1353 = vmatpush2.msra.mxu0 0.0
        %1354 = vmatprep.subr.mxu0 0.0
        %1355 = vmatpush2.msra.mxu0 0.0
        %1356 = vmatprep.subr.mxu0 0.0
        %1357 = vmatpush2.msra.mxu0 0.0
        %1358 = vmatprep.subr.mxu0 0.0
        %1359 = vmatpush2.msra.mxu0 0.0
        %1360 = vmatprep.subr.mxu0 0.0
        %1361 = vmatpush2.msra.mxu0 0.0
        %1362 = vmatprep.subr.mxu0 0.0
        %1363 = vmatpush2.msra.mxu0 0.0
        %1364 = vmatprep.subr.mxu0 0.0
        %1365 = vmatpush2.msra.mxu0 0.0
        %1366 = vmatprep.subr.mxu0 0.0
        %1367 = vmatpush2.msra.mxu0 0.0
        %1368 = vmatprep.subr.mxu0 0.0
        %1369 = vmatpush2.msra.mxu0 0.0
        %1370 = vmatprep.subr.mxu0 0.0
        %1371 = vmatpush2.msra.mxu0 0.0
        %1372 = vmatprep.subr.mxu0 0.0
        %1373 = vmatpush2.msra.mxu0 0.0
        %1374 = vmatprep.subr.mxu0 0.0
        %1375 = vmatpush2.msra.mxu0 0.0
        %1376 = vmatprep.subr.mxu0 0.0
        %1377 = vmatpush2.msra.mxu0 0.0
        %1378 = vmatprep.subr.mxu0 0.0
        %1379 = vmatpush2.msra.mxu0 0.0
        %1380 = vmatprep.mubr.f32.mxu0 0.0
        %1381 = vmatmul.mubr.f32.gmra.mxu0 %v1314
        %v1382 = vpop.f32.mrf.mxu0
        %v1383 = vadd.f32 %v1309, %v1382
        %v1384 = vpop.f32.mrf.mxu0
        %v1385 = vadd.f32 %v1311, %v1384
        %1386 = vdwg.mxu0
        %1387 = vrot.lane.b32.xlu0 %v1205, 15
        %v1388 = vpop.permute.xlu0 %1387
        %1389 = vrot.lane.b32.xlu0 %v1206, 15
        %v1390 = vpop.permute.xlu0 %1389
        %1391 = vrot.lane.b32.xlu0 %v1207, 15
        %v1392 = vpop.permute.xlu0 %1391
        %v1393 = vsel %vm483, %v1388, %v1390
        %v1394 = vsel %vm483, %v1390, %v1392
        %v1397 = vsel %vm472, %v1393, 0.0
        %v1398 = vsel %vm473, %v1394, 0.0
        %s1399 = scalar_lea.vmem %s3, 16
        %v1400 = vld [vmem:[%s1399] sm:$0xff]
        %v1402 = vsel %vm1238, %v1400, 0
        %1404 = vmatprep.subr.mxu0 0.0
        %1405 = vmatpush1.msra.mxu0 0.0
        %1406 = vmatprep.subr.mxu0 0.0
        %1407 = vmatpush1.msra.mxu0 0.0
        %1408 = vmatprep.subr.mxu0 0.0
        %1409 = vmatpush1.msra.mxu0 0.0
        %1410 = vmatprep.subr.mxu0 0.0
        %1411 = vmatpush1.msra.mxu0 0.0
        %1412 = vmatprep.subr.mxu0 0.0
        %1413 = vmatpush1.msra.mxu0 0.0
        %1414 = vmatprep.subr.mxu0 0.0
        %1415 = vmatpush1.msra.mxu0 0.0
        %1416 = vmatprep.subr.mxu0 0.0
        %1417 = vmatpush1.msra.mxu0 0.0
        %1418 = vmatprep.subr.mxu0 0.0
        %1419 = vmatpush1.msra.mxu0 0.0
        %1420 = vmatprep.subr.mxu0 0.0
        %1421 = vmatpush1.msra.mxu0 0.0
        %1422 = vmatprep.subr.mxu0 0.0
        %1423 = vmatpush1.msra.mxu0 0.0
        %1424 = vmatprep.subr.mxu0 0.0
        %1425 = vmatpush1.msra.mxu0 0.0
        %1426 = vmatprep.subr.mxu0 0.0
        %1427 = vmatpush1.msra.mxu0 0.0
        %1428 = vmatprep.subr.mxu0 0.0
        %1429 = vmatpush1.msra.mxu0 0.0
        %1430 = vmatprep.subr.mxu0 0.0
        %1431 = vmatpush1.msra.mxu0 0.0
        %1432 = vmatprep.subr.mxu0 0.0
        %1433 = vmatpush1.msra.mxu0 0.0
        %1434 = vmatprep.subr.mxu0 %v1398
        %1435 = vmatpush1.msra.mxu0 %v1397
        %1436 = vmatprep.subr.mxu0 0.0
        %1437 = vmatpush2.msra.mxu0 0.0
        %1438 = vmatprep.subr.mxu0 0.0
        %1439 = vmatpush2.msra.mxu0 0.0
        %1440 = vmatprep.subr.mxu0 0.0
        %1441 = vmatpush2.msra.mxu0 0.0
        %1442 = vmatprep.subr.mxu0 0.0
        %1443 = vmatpush2.msra.mxu0 0.0
        %1444 = vmatprep.subr.mxu0 0.0
        %1445 = vmatpush2.msra.mxu0 0.0
        %1446 = vmatprep.subr.mxu0 0.0
        %1447 = vmatpush2.msra.mxu0 0.0
        %1448 = vmatprep.subr.mxu0 0.0
        %1449 = vmatpush2.msra.mxu0 0.0
        %1450 = vmatprep.subr.mxu0 0.0
        %1451 = vmatpush2.msra.mxu0 0.0
        %1452 = vmatprep.subr.mxu0 0.0
        %1453 = vmatpush2.msra.mxu0 0.0
        %1454 = vmatprep.subr.mxu0 0.0
        %1455 = vmatpush2.msra.mxu0 0.0
        %1456 = vmatprep.subr.mxu0 0.0
        %1457 = vmatpush2.msra.mxu0 0.0
        %1458 = vmatprep.subr.mxu0 0.0
        %1459 = vmatpush2.msra.mxu0 0.0
        %1460 = vmatprep.subr.mxu0 0.0
        %1461 = vmatpush2.msra.mxu0 0.0
        %1462 = vmatprep.subr.mxu0 0.0
        %1463 = vmatpush2.msra.mxu0 0.0
        %1464 = vmatprep.subr.mxu0 0.0
        %1465 = vmatpush2.msra.mxu0 0.0
        %1466 = vmatprep.subr.mxu0 0.0
        %1467 = vmatpush2.msra.mxu0 0.0
        %1468 = vmatprep.mubr.f32.mxu0 0.0
        %1469 = vmatmul.mubr.f32.gmra.mxu0 %v1402
        %v1470 = vpop.f32.mrf.mxu0
        %v1471 = vadd.f32 0.0, %v1470
        %v1472 = vpop.f32.mrf.mxu0
        %v1473 = vadd.f32 0.0, %v1472
        %1474 = vdwg.mxu0
        %v1475 = vadd.f32 %v1383, %v1471
        %v1476 = vadd.f32 %v1385, %v1473
        %1477 = vrot.lane.b32.xlu0 %v1205, 1
        %v1478 = vpop.permute.xlu0 %1477
        %1479 = vrot.lane.b32.xlu0 %v1206, 1
        %v1480 = vpop.permute.xlu0 %1479
        %1481 = vrot.lane.b32.xlu0 %v1207, 1
        %v1482 = vpop.permute.xlu0 %1481
        %v1483 = vsel %vm589, %v1478, %v1480
        %v1484 = vsel %vm589, %v1480, %v1482
        %v1487 = vsel %vm578, %v1483, 0.0
        %v1488 = vsel %vm579, %v1484, 0.0
        %s1489 = scalar_lea.vmem %s3, 24
        %v1490 = vld [vmem:[%s1489] sm:$0xff]
        %v1492 = vsel %vm1238, %v1490, 0
        %1494 = vmatprep.subr.mxu0 0.0
        %1495 = vmatpush1.msra.mxu0 0.0
        %1496 = vmatprep.subr.mxu0 0.0
        %1497 = vmatpush1.msra.mxu0 0.0
        %1498 = vmatprep.subr.mxu0 0.0
        %1499 = vmatpush1.msra.mxu0 0.0
        %1500 = vmatprep.subr.mxu0 0.0
        %1501 = vmatpush1.msra.mxu0 0.0
        %1502 = vmatprep.subr.mxu0 0.0
        %1503 = vmatpush1.msra.mxu0 0.0
        %1504 = vmatprep.subr.mxu0 0.0
        %1505 = vmatpush1.msra.mxu0 0.0
        %1506 = vmatprep.subr.mxu0 0.0
        %1507 = vmatpush1.msra.mxu0 0.0
        %1508 = vmatprep.subr.mxu0 0.0
        %1509 = vmatpush1.msra.mxu0 0.0
        %1510 = vmatprep.subr.mxu0 0.0
        %1511 = vmatpush1.msra.mxu0 0.0
        %1512 = vmatprep.subr.mxu0 0.0
        %1513 = vmatpush1.msra.mxu0 0.0
        %1514 = vmatprep.subr.mxu0 0.0
        %1515 = vmatpush1.msra.mxu0 0.0
        %1516 = vmatprep.subr.mxu0 0.0
        %1517 = vmatpush1.msra.mxu0 0.0
        %1518 = vmatprep.subr.mxu0 0.0
        %1519 = vmatpush1.msra.mxu0 0.0
        %1520 = vmatprep.subr.mxu0 0.0
        %1521 = vmatpush1.msra.mxu0 0.0
        %1522 = vmatprep.subr.mxu0 0.0
        %1523 = vmatpush1.msra.mxu0 0.0
        %1524 = vmatprep.subr.mxu0 %v1488
        %1525 = vmatpush1.msra.mxu0 %v1487
        %1526 = vmatprep.subr.mxu0 0.0
        %1527 = vmatpush2.msra.mxu0 0.0
        %1528 = vmatprep.subr.mxu0 0.0
        %1529 = vmatpush2.msra.mxu0 0.0
        %1530 = vmatprep.subr.mxu0 0.0
        %1531 = vmatpush2.msra.mxu0 0.0
        %1532 = vmatprep.subr.mxu0 0.0
        %1533 = vmatpush2.msra.mxu0 0.0
        %1534 = vmatprep.subr.mxu0 0.0
        %1535 = vmatpush2.msra.mxu0 0.0
        %1536 = vmatprep.subr.mxu0 0.0
        %1537 = vmatpush2.msra.mxu0 0.0
        %1538 = vmatprep.subr.mxu0 0.0
        %1539 = vmatpush2.msra.mxu0 0.0
        %1540 = vmatprep.subr.mxu0 0.0
        %1541 = vmatpush2.msra.mxu0 0.0
        %1542 = vmatprep.subr.mxu0 0.0
        %1543 = vmatpush2.msra.mxu0 0.0
        %1544 = vmatprep.subr.mxu0 0.0
        %1545 = vmatpush2.msra.mxu0 0.0
        %1546 = vmatprep.subr.mxu0 0.0
        %1547 = vmatpush2.msra.mxu0 0.0
        %1548 = vmatprep.subr.mxu0 0.0
        %1549 = vmatpush2.msra.mxu0 0.0
        %1550 = vmatprep.subr.mxu0 0.0
        %1551 = vmatpush2.msra.mxu0 0.0
        %1552 = vmatprep.subr.mxu0 0.0
        %1553 = vmatpush2.msra.mxu0 0.0
        %1554 = vmatprep.subr.mxu0 0.0
        %1555 = vmatpush2.msra.mxu0 0.0
        %1556 = vmatprep.subr.mxu0 0.0
        %1557 = vmatpush2.msra.mxu0 0.0
        %1558 = vmatprep.mubr.f32.mxu0 0.0
        %1559 = vmatmul.mubr.f32.gmra.mxu0 %v1492
        %v1560 = vpop.f32.mrf.mxu0
        %v1561 = vadd.f32 0.0, %v1560
        %v1562 = vpop.f32.mrf.mxu0
        %v1563 = vadd.f32 0.0, %v1562
        %1564 = vdwg.mxu0
        %v1565 = vadd.f32 %v1475, %v1561
        %v1566 = vadd.f32 %v1476, %v1563
        %s1567 = scalar_lea.vmem %s3, 32
        %v1568 = vld [vmem:[%s1567] sm:$0xff]
        %v1570 = vsel %vm1238, %v1568, 0
        %1572 = vmatprep.subr.mxu0 0.0
        %1573 = vmatpush1.msra.mxu0 0.0
        %1574 = vmatprep.subr.mxu0 0.0
        %1575 = vmatpush1.msra.mxu0 0.0
        %1576 = vmatprep.subr.mxu0 0.0
        %1577 = vmatpush1.msra.mxu0 0.0
        %1578 = vmatprep.subr.mxu0 0.0
        %1579 = vmatpush1.msra.mxu0 0.0
        %1580 = vmatprep.subr.mxu0 0.0
        %1581 = vmatpush1.msra.mxu0 0.0
        %1582 = vmatprep.subr.mxu0 0.0
        %1583 = vmatpush1.msra.mxu0 0.0
        %1584 = vmatprep.subr.mxu0 0.0
        %1585 = vmatpush1.msra.mxu0 0.0
        %1586 = vmatprep.subr.mxu0 0.0
        %1587 = vmatpush1.msra.mxu0 0.0
        %1588 = vmatprep.subr.mxu0 0.0
        %1589 = vmatpush1.msra.mxu0 0.0
        %1590 = vmatprep.subr.mxu0 0.0
        %1591 = vmatpush1.msra.mxu0 0.0
        %1592 = vmatprep.subr.mxu0 0.0
        %1593 = vmatpush1.msra.mxu0 0.0
        %1594 = vmatprep.subr.mxu0 0.0
        %1595 = vmatpush1.msra.mxu0 0.0
        %1596 = vmatprep.subr.mxu0 0.0
        %1597 = vmatpush1.msra.mxu0 0.0
        %1598 = vmatprep.subr.mxu0 0.0
        %1599 = vmatpush1.msra.mxu0 0.0
        %1600 = vmatprep.subr.mxu0 0.0
        %1601 = vmatpush1.msra.mxu0 0.0
        %1602 = vmatprep.subr.mxu0 %v1207
        %1603 = vmatpush1.msra.mxu0 %v1206
        %1604 = vmatprep.subr.mxu0 0.0
        %1605 = vmatpush2.msra.mxu0 0.0
        %1606 = vmatprep.subr.mxu0 0.0
        %1607 = vmatpush2.msra.mxu0 0.0
        %1608 = vmatprep.subr.mxu0 0.0
        %1609 = vmatpush2.msra.mxu0 0.0
        %1610 = vmatprep.subr.mxu0 0.0
        %1611 = vmatpush2.msra.mxu0 0.0
        %1612 = vmatprep.subr.mxu0 0.0
        %1613 = vmatpush2.msra.mxu0 0.0
        %1614 = vmatprep.subr.mxu0 0.0
        %1615 = vmatpush2.msra.mxu0 0.0
        %1616 = vmatprep.subr.mxu0 0.0
        %1617 = vmatpush2.msra.mxu0 0.0
        %1618 = vmatprep.subr.mxu0 0.0
        %1619 = vmatpush2.msra.mxu0 0.0
        %1620 = vmatprep.subr.mxu0 0.0
        %1621 = vmatpush2.msra.mxu0 0.0
        %1622 = vmatprep.subr.mxu0 0.0
        %1623 = vmatpush2.msra.mxu0 0.0
        %1624 = vmatprep.subr.mxu0 0.0
        %1625 = vmatpush2.msra.mxu0 0.0
        %1626 = vmatprep.subr.mxu0 0.0
        %1627 = vmatpush2.msra.mxu0 0.0
        %1628 = vmatprep.subr.mxu0 0.0
        %1629 = vmatpush2.msra.mxu0 0.0
        %1630 = vmatprep.subr.mxu0 0.0
        %1631 = vmatpush2.msra.mxu0 0.0
        %1632 = vmatprep.subr.mxu0 0.0
        %1633 = vmatpush2.msra.mxu0 0.0
        %1634 = vmatprep.subr.mxu0 0.0
        %1635 = vmatpush2.msra.mxu0 0.0
        %1636 = vmatprep.mubr.f32.mxu0 0.0
        %1637 = vmatmul.mubr.f32.gmra.mxu0 %v1570
        %v1638 = vpop.f32.mrf.mxu0
        %v1639 = vadd.f32 0.0, %v1638
        %v1640 = vpop.f32.mrf.mxu0
        %v1641 = vadd.f32 0.0, %v1640
        %1642 = vdwg.mxu0
        %v1643 = vadd.f32 %v1565, %v1639
        %v1644 = vadd.f32 %v1566, %v1641
        %v1645 = vld [vmem:[#allocation3 + $0x8] sm:$0xff]
        %v1646 = vld [vmem:[#allocation3 + $0x10] sm:$0xff]
        %v1647 = vld [vmem:[#allocation3 + $0x18] sm:$0xff]
        %1651 = vrot.lane.b32.xlu0 %v1645, 127
        %v1652 = vpop.permute.xlu0 %1651
        %1653 = vrot.lane.b32.xlu0 %v1646, 127
        %v1654 = vpop.permute.xlu0 %1653
        %1655 = vrot.lane.b32.xlu0 %v1647, 127
        %v1656 = vpop.permute.xlu0 %1655
        %v1657 = vsel %vm780, %v1652, %v1654
        %v1658 = vsel %vm780, %v1654, %v1656
        %v1661 = vsel %vm769, %v1657, 0.0
        %v1662 = vsel %vm770, %v1658, 0.0
        %s1663 = scalar_lea.vmem %s3, 40
        %v1664 = vld [vmem:[%s1663] sm:$0xff]
        %v1666 = vsel %vm1238, %v1664, 0
        %1668 = vmatprep.subr.mxu0 0.0
        %1669 = vmatpush1.msra.mxu0 0.0
        %1670 = vmatprep.subr.mxu0 0.0
        %1671 = vmatpush1.msra.mxu0 0.0
        %1672 = vmatprep.subr.mxu0 0.0
        %1673 = vmatpush1.msra.mxu0 0.0
        %1674 = vmatprep.subr.mxu0 0.0
        %1675 = vmatpush1.msra.mxu0 0.0
        %1676 = vmatprep.subr.mxu0 0.0
        %1677 = vmatpush1.msra.mxu0 0.0
        %1678 = vmatprep.subr.mxu0 0.0
        %1679 = vmatpush1.msra.mxu0 0.0
        %1680 = vmatprep.subr.mxu0 0.0
        %1681 = vmatpush1.msra.mxu0 0.0
        %1682 = vmatprep.subr.mxu0 0.0
        %1683 = vmatpush1.msra.mxu0 0.0
        %1684 = vmatprep.subr.mxu0 0.0
        %1685 = vmatpush1.msra.mxu0 0.0
        %1686 = vmatprep.subr.mxu0 0.0
        %1687 = vmatpush1.msra.mxu0 0.0
        %1688 = vmatprep.subr.mxu0 0.0
        %1689 = vmatpush1.msra.mxu0 0.0
        %1690 = vmatprep.subr.mxu0 0.0
        %1691 = vmatpush1.msra.mxu0 0.0
        %1692 = vmatprep.subr.mxu0 0.0
        %1693 = vmatpush1.msra.mxu0 0.0
        %1694 = vmatprep.subr.mxu0 0.0
        %1695 = vmatpush1.msra.mxu0 0.0
        %1696 = vmatprep.subr.mxu0 0.0
        %1697 = vmatpush1.msra.mxu0 0.0
        %1698 = vmatprep.subr.mxu0 %v1662
        %1699 = vmatpush1.msra.mxu0 %v1661
        %1700 = vmatprep.subr.mxu0 0.0
        %1701 = vmatpush2.msra.mxu0 0.0
        %1702 = vmatprep.subr.mxu0 0.0
        %1703 = vmatpush2.msra.mxu0 0.0
        %1704 = vmatprep.subr.mxu0 0.0
        %1705 = vmatpush2.msra.mxu0 0.0
        %1706 = vmatprep.subr.mxu0 0.0
        %1707 = vmatpush2.msra.mxu0 0.0
        %1708 = vmatprep.subr.mxu0 0.0
        %1709 = vmatpush2.msra.mxu0 0.0
        %1710 = vmatprep.subr.mxu0 0.0
        %1711 = vmatpush2.msra.mxu0 0.0
        %1712 = vmatprep.subr.mxu0 0.0
        %1713 = vmatpush2.msra.mxu0 0.0
        %1714 = vmatprep.subr.mxu0 0.0
        %1715 = vmatpush2.msra.mxu0 0.0
        %1716 = vmatprep.subr.mxu0 0.0
        %1717 = vmatpush2.msra.mxu0 0.0
        %1718 = vmatprep.subr.mxu0 0.0
        %1719 = vmatpush2.msra.mxu0 0.0
        %1720 = vmatprep.subr.mxu0 0.0
        %1721 = vmatpush2.msra.mxu0 0.0
        %1722 = vmatprep.subr.mxu0 0.0
        %1723 = vmatpush2.msra.mxu0 0.0
        %1724 = vmatprep.subr.mxu0 0.0
        %1725 = vmatpush2.msra.mxu0 0.0
        %1726 = vmatprep.subr.mxu0 0.0
        %1727 = vmatpush2.msra.mxu0 0.0
        %1728 = vmatprep.subr.mxu0 0.0
        %1729 = vmatpush2.msra.mxu0 0.0
        %1730 = vmatprep.subr.mxu0 0.0
        %1731 = vmatpush2.msra.mxu0 0.0
        %1732 = vmatprep.mubr.f32.mxu0 0.0
        %1733 = vmatmul.mubr.f32.gmra.mxu0 %v1666
        %v1734 = vpop.f32.mrf.mxu0
        %v1735 = vadd.f32 0.0, %v1734
        %v1736 = vpop.f32.mrf.mxu0
        %v1737 = vadd.f32 0.0, %v1736
        %1738 = vdwg.mxu0
        %v1739 = vadd.f32 %v1643, %v1735
        %v1740 = vadd.f32 %v1644, %v1737
        %1741 = vrot.lane.b32.xlu0 %v1645, 113
        %v1742 = vpop.permute.xlu0 %1741
        %1743 = vrot.lane.b32.xlu0 %v1646, 113
        %v1744 = vpop.permute.xlu0 %1743
        %1745 = vrot.lane.b32.xlu0 %v1647, 113
        %v1746 = vpop.permute.xlu0 %1745
        %v1747 = vsel %vm888, %v1742, %v1744
        %v1748 = vsel %vm888, %v1744, %v1746
        %v1751 = vsel %vm877, %v1747, 0.0
        %v1752 = vsel %vm878, %v1748, 0.0
        %s1753 = scalar_lea.vmem %s3, 48
        %v1754 = vld [vmem:[%s1753] sm:$0xff]
        %v1756 = vsel %vm1238, %v1754, 0
        %1758 = vmatprep.subr.mxu0 0.0
        %1759 = vmatpush1.msra.mxu0 0.0
        %1760 = vmatprep.subr.mxu0 0.0
        %1761 = vmatpush1.msra.mxu0 0.0
        %1762 = vmatprep.subr.mxu0 0.0
        %1763 = vmatpush1.msra.mxu0 0.0
        %1764 = vmatprep.subr.mxu0 0.0
        %1765 = vmatpush1.msra.mxu0 0.0
        %1766 = vmatprep.subr.mxu0 0.0
        %1767 = vmatpush1.msra.mxu0 0.0
        %1768 = vmatprep.subr.mxu0 0.0
        %1769 = vmatpush1.msra.mxu0 0.0
        %1770 = vmatprep.subr.mxu0 0.0
        %1771 = vmatpush1.msra.mxu0 0.0
        %1772 = vmatprep.subr.mxu0 0.0
        %1773 = vmatpush1.msra.mxu0 0.0
        %1774 = vmatprep.subr.mxu0 0.0
        %1775 = vmatpush1.msra.mxu0 0.0
        %1776 = vmatprep.subr.mxu0 0.0
        %1777 = vmatpush1.msra.mxu0 0.0
        %1778 = vmatprep.subr.mxu0 0.0
        %1779 = vmatpush1.msra.mxu0 0.0
        %1780 = vmatprep.subr.mxu0 0.0
        %1781 = vmatpush1.msra.mxu0 0.0
        %1782 = vmatprep.subr.mxu0 0.0
        %1783 = vmatpush1.msra.mxu0 0.0
        %1784 = vmatprep.subr.mxu0 0.0
        %1785 = vmatpush1.msra.mxu0 0.0
        %1786 = vmatprep.subr.mxu0 0.0
        %1787 = vmatpush1.msra.mxu0 0.0
        %1788 = vmatprep.subr.mxu0 %v1752
        %1789 = vmatpush1.msra.mxu0 %v1751
        %1790 = vmatprep.subr.mxu0 0.0
        %1791 = vmatpush2.msra.mxu0 0.0
        %1792 = vmatprep.subr.mxu0 0.0
        %1793 = vmatpush2.msra.mxu0 0.0
        %1794 = vmatprep.subr.mxu0 0.0
        %1795 = vmatpush2.msra.mxu0 0.0
        %1796 = vmatprep.subr.mxu0 0.0
        %1797 = vmatpush2.msra.mxu0 0.0
        %1798 = vmatprep.subr.mxu0 0.0
        %1799 = vmatpush2.msra.mxu0 0.0
        %1800 = vmatprep.subr.mxu0 0.0
        %1801 = vmatpush2.msra.mxu0 0.0
        %1802 = vmatprep.subr.mxu0 0.0
        %1803 = vmatpush2.msra.mxu0 0.0
        %1804 = vmatprep.subr.mxu0 0.0
        %1805 = vmatpush2.msra.mxu0 0.0
        %1806 = vmatprep.subr.mxu0 0.0
        %1807 = vmatpush2.msra.mxu0 0.0
        %1808 = vmatprep.subr.mxu0 0.0
        %1809 = vmatpush2.msra.mxu0 0.0
        %1810 = vmatprep.subr.mxu0 0.0
        %1811 = vmatpush2.msra.mxu0 0.0
        %1812 = vmatprep.subr.mxu0 0.0
        %1813 = vmatpush2.msra.mxu0 0.0
        %1814 = vmatprep.subr.mxu0 0.0
        %1815 = vmatpush2.msra.mxu0 0.0
        %1816 = vmatprep.subr.mxu0 0.0
        %1817 = vmatpush2.msra.mxu0 0.0
        %1818 = vmatprep.subr.mxu0 0.0
        %1819 = vmatpush2.msra.mxu0 0.0
        %1820 = vmatprep.subr.mxu0 0.0
        %1821 = vmatpush2.msra.mxu0 0.0
        %1822 = vmatprep.mubr.f32.mxu0 0.0
        %1823 = vmatmul.mubr.f32.gmra.mxu0 %v1756
        %v1824 = vpop.f32.mrf.mxu0
        %v1825 = vadd.f32 0.0, %v1824
        %v1826 = vpop.f32.mrf.mxu0
        %v1827 = vadd.f32 0.0, %v1826
        %1828 = vdwg.mxu0
        %v1829 = vadd.f32 %v1739, %v1825
        %v1830 = vadd.f32 %v1740, %v1827
        %1831 = vrot.lane.b32.xlu0 %v1645, 112
        %v1832 = vpop.permute.xlu0 %1831
        %1833 = vrot.lane.b32.xlu0 %v1646, 112
        %v1834 = vpop.permute.xlu0 %1833
        %1835 = vrot.lane.b32.xlu0 %v1647, 112
        %v1836 = vpop.permute.xlu0 %1835
        %v1837 = vsel %vm994, %v1832, %v1834
        %v1838 = vsel %vm994, %v1834, %v1836
        %v1841 = vsel %vm983, %v1837, 0.0
        %v1842 = vsel %vm984, %v1838, 0.0
        %s1843 = scalar_lea.vmem %s3, 56
        %v1844 = vld [vmem:[%s1843] sm:$0xff]
        %v1846 = vsel %vm1238, %v1844, 0
        %1848 = vmatprep.subr.mxu0 0.0
        %1849 = vmatpush1.msra.mxu0 0.0
        %1850 = vmatprep.subr.mxu0 0.0
        %1851 = vmatpush1.msra.mxu0 0.0
        %1852 = vmatprep.subr.mxu0 0.0
        %1853 = vmatpush1.msra.mxu0 0.0
        %1854 = vmatprep.subr.mxu0 0.0
        %1855 = vmatpush1.msra.mxu0 0.0
        %1856 = vmatprep.subr.mxu0 0.0
        %1857 = vmatpush1.msra.mxu0 0.0
        %1858 = vmatprep.subr.mxu0 0.0
        %1859 = vmatpush1.msra.mxu0 0.0
        %1860 = vmatprep.subr.mxu0 0.0
        %1861 = vmatpush1.msra.mxu0 0.0
        %1862 = vmatprep.subr.mxu0 0.0
        %1863 = vmatpush1.msra.mxu0 0.0
        %1864 = vmatprep.subr.mxu0 0.0
        %1865 = vmatpush1.msra.mxu0 0.0
        %1866 = vmatprep.subr.mxu0 0.0
        %1867 = vmatpush1.msra.mxu0 0.0
        %1868 = vmatprep.subr.mxu0 0.0
        %1869 = vmatpush1.msra.mxu0 0.0
        %1870 = vmatprep.subr.mxu0 0.0
        %1871 = vmatpush1.msra.mxu0 0.0
        %1872 = vmatprep.subr.mxu0 0.0
        %1873 = vmatpush1.msra.mxu0 0.0
        %1874 = vmatprep.subr.mxu0 0.0
        %1875 = vmatpush1.msra.mxu0 0.0
        %1876 = vmatprep.subr.mxu0 0.0
        %1877 = vmatpush1.msra.mxu0 0.0
        %1878 = vmatprep.subr.mxu0 %v1842
        %1879 = vmatpush1.msra.mxu0 %v1841
        %1880 = vmatprep.subr.mxu0 0.0
        %1881 = vmatpush2.msra.mxu0 0.0
        %1882 = vmatprep.subr.mxu0 0.0
        %1883 = vmatpush2.msra.mxu0 0.0
        %1884 = vmatprep.subr.mxu0 0.0
        %1885 = vmatpush2.msra.mxu0 0.0
        %1886 = vmatprep.subr.mxu0 0.0
        %1887 = vmatpush2.msra.mxu0 0.0
        %1888 = vmatprep.subr.mxu0 0.0
        %1889 = vmatpush2.msra.mxu0 0.0
        %1890 = vmatprep.subr.mxu0 0.0
        %1891 = vmatpush2.msra.mxu0 0.0
        %1892 = vmatprep.subr.mxu0 0.0
        %1893 = vmatpush2.msra.mxu0 0.0
        %1894 = vmatprep.subr.mxu0 0.0
        %1895 = vmatpush2.msra.mxu0 0.0
        %1896 = vmatprep.subr.mxu0 0.0
        %1897 = vmatpush2.msra.mxu0 0.0
        %1898 = vmatprep.subr.mxu0 0.0
        %1899 = vmatpush2.msra.mxu0 0.0
        %1900 = vmatprep.subr.mxu0 0.0
        %1901 = vmatpush2.msra.mxu0 0.0
        %1902 = vmatprep.subr.mxu0 0.0
        %1903 = vmatpush2.msra.mxu0 0.0
        %1904 = vmatprep.subr.mxu0 0.0
        %1905 = vmatpush2.msra.mxu0 0.0
        %1906 = vmatprep.subr.mxu0 0.0
        %1907 = vmatpush2.msra.mxu0 0.0
        %1908 = vmatprep.subr.mxu0 0.0
        %1909 = vmatpush2.msra.mxu0 0.0
        %1910 = vmatprep.subr.mxu0 0.0
        %1911 = vmatpush2.msra.mxu0 0.0
        %1912 = vmatprep.mubr.f32.mxu0 0.0
        %1913 = vmatmul.mubr.f32.gmra.mxu0 %v1846
        %v1914 = vpop.f32.mrf.mxu0
        %v1915 = vadd.f32 0.0, %v1914
        %v1916 = vpop.f32.mrf.mxu0
        %v1917 = vadd.f32 0.0, %v1916
        %1918 = vdwg.mxu0
        %v1919 = vadd.f32 %v1829, %v1915
        %v1920 = vadd.f32 %v1830, %v1917
        %1921 = vrot.lane.b32.xlu0 %v1645, 111
        %v1922 = vpop.permute.xlu0 %1921
        %1923 = vrot.lane.b32.xlu0 %v1646, 111
        %v1924 = vpop.permute.xlu0 %1923
        %1925 = vrot.lane.b32.xlu0 %v1647, 111
        %v1926 = vpop.permute.xlu0 %1925
        %v1927 = vsel %vm1102, %v1922, %v1924
        %v1928 = vsel %vm1102, %v1924, %v1926
        %v1931 = vsel %vm1091, %v1927, 0.0
        %v1932 = vsel %vm1092, %v1928, 0.0
        %s1933 = scalar_lea.vmem %s3, 64
        %v1934 = vld [vmem:[%s1933] sm:$0xff]
        %v1936 = vsel %vm1238, %v1934, 0
        %1938 = vmatprep.subr.mxu0 0.0
        %1939 = vmatpush1.msra.mxu0 0.0
        %1940 = vmatprep.subr.mxu0 0.0
        %1941 = vmatpush1.msra.mxu0 0.0
        %1942 = vmatprep.subr.mxu0 0.0
        %1943 = vmatpush1.msra.mxu0 0.0
        %1944 = vmatprep.subr.mxu0 0.0
        %1945 = vmatpush1.msra.mxu0 0.0
        %1946 = vmatprep.subr.mxu0 0.0
        %1947 = vmatpush1.msra.mxu0 0.0
        %1948 = vmatprep.subr.mxu0 0.0
        %1949 = vmatpush1.msra.mxu0 0.0
        %1950 = vmatprep.subr.mxu0 0.0
        %1951 = vmatpush1.msra.mxu0 0.0
        %1952 = vmatprep.subr.mxu0 0.0
        %1953 = vmatpush1.msra.mxu0 0.0
        %1954 = vmatprep.subr.mxu0 0.0
        %1955 = vmatpush1.msra.mxu0 0.0
        %1956 = vmatprep.subr.mxu0 0.0
        %1957 = vmatpush1.msra.mxu0 0.0
        %1958 = vmatprep.subr.mxu0 0.0
        %1959 = vmatpush1.msra.mxu0 0.0
        %1960 = vmatprep.subr.mxu0 0.0
        %1961 = vmatpush1.msra.mxu0 0.0
        %1962 = vmatprep.subr.mxu0 0.0
        %1963 = vmatpush1.msra.mxu0 0.0
        %1964 = vmatprep.subr.mxu0 0.0
        %1965 = vmatpush1.msra.mxu0 0.0
        %1966 = vmatprep.subr.mxu0 0.0
        %1967 = vmatpush1.msra.mxu0 0.0
        %1968 = vmatprep.subr.mxu0 %v1932
        %1969 = vmatpush1.msra.mxu0 %v1931
        %1970 = vmatprep.subr.mxu0 0.0
        %1971 = vmatpush2.msra.mxu0 0.0
        %1972 = vmatprep.subr.mxu0 0.0
        %1973 = vmatpush2.msra.mxu0 0.0
        %1974 = vmatprep.subr.mxu0 0.0
        %1975 = vmatpush2.msra.mxu0 0.0
        %1976 = vmatprep.subr.mxu0 0.0
        %1977 = vmatpush2.msra.mxu0 0.0
        %1978 = vmatprep.subr.mxu0 0.0
        %1979 = vmatpush2.msra.mxu0 0.0
        %1980 = vmatprep.subr.mxu0 0.0
        %1981 = vmatpush2.msra.mxu0 0.0
        %1982 = vmatprep.subr.mxu0 0.0
        %1983 = vmatpush2.msra.mxu0 0.0
        %1984 = vmatprep.subr.mxu0 0.0
        %1985 = vmatpush2.msra.mxu0 0.0
        %1986 = vmatprep.subr.mxu0 0.0
        %1987 = vmatpush2.msra.mxu0 0.0
        %1988 = vmatprep.subr.mxu0 0.0
        %1989 = vmatpush2.msra.mxu0 0.0
        %1990 = vmatprep.subr.mxu0 0.0
        %1991 = vmatpush2.msra.mxu0 0.0
        %1992 = vmatprep.subr.mxu0 0.0
        %1993 = vmatpush2.msra.mxu0 0.0
        %1994 = vmatprep.subr.mxu0 0.0
        %1995 = vmatpush2.msra.mxu0 0.0
        %1996 = vmatprep.subr.mxu0 0.0
        %1997 = vmatpush2.msra.mxu0 0.0
        %1998 = vmatprep.subr.mxu0 0.0
        %1999 = vmatpush2.msra.mxu0 0.0
        %2000 = vmatprep.subr.mxu0 0.0
        %2001 = vmatpush2.msra.mxu0 0.0
        %2002 = vmatprep.mubr.f32.mxu0 0.0
        %2003 = vmatmul.mubr.f32.gmra.mxu0 %v1936
        %v2004 = vpop.f32.mrf.mxu0
        %v2005 = vadd.f32 0.0, %v2004
        %v2006 = vpop.f32.mrf.mxu0
        %v2007 = vadd.f32 0.0, %v2006
        %2008 = vdwg.mxu0
        %v2009 = vadd.f32 %v1919, %v2005
        %v2010 = vadd.f32 %v1920, %v2007
        %v2011 = vld [vmem:[%s4] sm:$0xff]
        %2013 = vset.pattern.permute.xlu0 0
        %2014 = vperm.xlu0 %2013, %v2011
        %v2015 = vpop.permute.xlu0 %2014
        %v2017 = vadd.f32 %v2009, %v2015
        %v2018 = vadd.f32 %v2010, %v2015
        %v2019 = vmax.f32 %v2017, 0.0
        %v2020 = vmax.f32 %v2018, 0.0
        %2021 = vst [vmem:[%s217] sm:$0xff] %v2019
        %2022 = vst [vmem:[%s217 + $0x8] sm:$0xff] %v2020
        %s2023 = sand.u32 %s137, 1
        %s2024 = scalar_lea.sflag [#allocation5], %s2023
        %s2025 = sand.u32 %s137, 1
        %s2026 = smul.addr %s2025, 16
        %s2027 = scalar_lea.vmem [#allocation4], %s2026
        // Predicated region
        $region41: #{tpu_custom_call.1} parent=39 // pred_check
          %p2028 = pneg %p147
        $region42: #{tpu_custom_call.1} parent=39 // pred_check_branch
          %2030 = sbr.rel (%p2028) target = $region44
        $region43: #{tpu_custom_call.1} parent=39 // pred_region
          %s2032 = ssub.s32 256, 256
          %2033 = vsyncadd %s2024, %s2032
          %s2034 = smul.addr %s19, 2
          %s2035 = smul.addr %s2034, 128
          %s2036 = scalar_lea.hbm %s5, %s2035
          %s2038 = sshll.u32 %s2027, 4
          %s2039 = int_to_ptr.vmem [resolvable:$true] %s2038
          %2041 = dma.vmem_to_hbm [thread:$0]  %s2039, 256, %s2036, %s2024
        $region44: #{tpu_custom_call.1} parent=39 // pred_fallthru
          _
      $region40: #{tpu_custom_call.1} parent=5 // pred_fallthru
        _
      %p2042 = scmp.le.s32.totalorder 2, %s14
      // Predicated region
      $region45: #{tpu_custom_call.1} parent=5 // pred_check
        %p2043 = pneg %p2042
      $region46: #{tpu_custom_call.1} parent=5 // pred_check_branch
        %2045 = sbr.rel (%p2043) target = $region48
      $region47: #{tpu_custom_call.1} parent=5 // pred_region
        %s2046 = ssub.s32 %s14, 2
        // Predicated region
        $region49: #{tpu_custom_call.1} parent=47 // pred_check
          %p2047 = pneg %p153
        $region50: #{tpu_custom_call.1} parent=47 // pred_check_branch
          %2049 = sbr.rel (%p2047) target = $region52
        $region51: #{tpu_custom_call.1} parent=47 // pred_region
          %s2050 = sand.u32 %s138, 1
          %s2051 = scalar_lea.sflag [#allocation5], %s2050
          %s2052 = sand.u32 %s138, 1
          %s2053 = smul.addr %s2052, 16
          %s2054 = scalar_lea.vmem [#allocation4], %s2053
          %2055 = dma.done %s2051, 256
        $region52: #{tpu_custom_call.1} parent=47 // pred_fallthru
          _
      $region48: #{tpu_custom_call.1} parent=5 // pred_fallthru
        _
    $region6: #{tpu_custom_call.1} parent=1 // loop_footer
      %s18 = sadd.s32 1, %s14
    $region7: #{tpu_custom_call.1} parent=1 // loop_footer_branch
      %13 = sbr.rel target = $region3
    $region8: #{tpu_custom_call.1} parent=1 // loop_exit
      _
    %2056 = vsyncpa [#allocation5], 1
    %s2057 = scalar_lea.sflag [#allocation5], 1
    %2058 = vsyncpa %s2057, 1

</llo_original>
